<compile_context>
chip_gen: v7x
topology: tpu7x:2x2x1
jax: 0.10.0
libtpu: 0.0.40
codegen_flags: <defaults>
</compile_context>

<pallas_src>
import numpy as np
import jax
import jax.numpy as jnp
from jax.experimental import pallas as pl
from jax.experimental.pallas import tpu as pltpu


def _round_up(a: int, m: int) -> int:
    return -(-a // m) * m


def _make_tabm_kernel(num_be: int, k: int):
    """Fused TabM_Naive forward for one batch tile (closure over layer count / k)."""

    def kernel(*refs):
        x_ref = refs[0]
        o_ref = refs[-2]
        head_buf = refs[-1]                    # VMEM scratch (bt, k*d_h) f32
        p = refs[1:-2]                         # 4*num_be params + head_w + head_b
        bt = x_ref.shape[0]

        # X = x.unsqueeze(1).repeat(1, k, 1), fused with the first layer's R mult.
        x = x_ref[...]                                         # (bt, d0)    f32
        r0 = p[0][...]                                         # (k, d0)     f32
        a3 = x[None, :, :] * r0[:, None, :]                    # (k, bt, d0) f32

        # ---- LinearBE + ReLU (+ Dropout) stack ----
        for l in range(num_be):
            r_ref, w_ref, s_ref, b_ref = p[4 * l: 4 * l + 4]
            if l > 0:                                          # layer 0's R already applied
                a3 = a3 * r_ref[...][:, None, :]               # X * R (implicit bcast)
            d_in = a3.shape[-1]
            a2 = a3.reshape(k * bt, d_in).astype(jnp.bfloat16)
            h2 = jnp.dot(a2, w_ref[...],                       # shared W, one MXU push
                         preferred_element_type=jnp.float32)   # (k*bt, d_mid) f32
            d_mid = h2.shape[-1]
            h3 = h2.reshape(k, bt, d_mid)
            a3 = jnp.maximum(                                  # * S + B, ReLU (f32 VPU)
                h3 * s_ref[...][:, None, :] + b_ref[...][:, None, :], 0.0)
            # TODO(synk): nn.Dropout(0.1) is identity in eval/inference mode;
            # training-mode dropout (pltpu.prng_* mask) is not implemented.

        # ---- prediction heads fused into one matmul (contraction K = k*d_h) ----
        wh_ref = p[4 * num_be]                 # (k*d_h, d_out) bf16, pre-scaled by 1/k
        bh_ref = p[4 * num_be + 1]             # (1, d_out)     f32, mean over heads
        d_h = a3.shape[-1]
        for j in range(k):                     # build a lane-dense (bt, k*d_h) slab
            head_buf[:, j * d_h:(j + 1) * d_h] = a3[j]
        a_cat = head_buf[...].astype(jnp.bfloat16)
        out = jnp.dot(a_cat, wh_ref[...], preferred_element_type=jnp.float32)
        o_ref[...] = (out + bh_ref[...]).astype(o_ref.dtype)

    return kernel


def _param_spec(shape, single_buffer: bool):
    """Full-array, grid-invariant (VMEM-resident) parameter block."""
    index_map = lambda i: (0,) * len(shape)
    if single_buffer:
        try:
            # Constant index_map -> double buffering gives zero pipelining benefit.
            return pl.BlockSpec(shape, index_map, pipeline_mode=pl.Buffered(1))
        except Exception:
            pass
    return pl.BlockSpec(shape, index_map)


def tabm_naive_forward(x, be_params, head_w, head_b, *, batch_tile=None):
    """TabM_Naive forward (mean_over_heads=True, eval mode).

    x         : (B, D0)
    be_params : list of (R (k,Din), W (Din,Dout), S (k,Dout), B (k,Dout))
    head_w    : (k, D_hidden, D_out)  (per-head nn.Linear weight, transposed)
    head_b    : (k, D_out)
    returns   : (B, D_out) float32
    """
    B, d0 = x.shape
    k, d_h, d_out = head_w.shape
    num_be = len(be_params)
    assert num_be >= 1, "need at least one LinearBE layer"

    widths = [d0] + [int(np.shape(W)[1]) for (_, W, _, _) in be_params]
    assert widths[-1] == d_h

    # ---- generation-aware VMEM budget (v7x: 64 MiB physical; v5e/v6e: 128 MiB) ----
    try:
        vmem_cap = int(pltpu.get_tpu_info().vmem_capacity_bytes)
    except Exception:
        vmem_cap = 64 * 1024 * 1024            # conservative (v7x per-core VMEM)
    vmem_budget = max(32 << 20, min((vmem_cap * 3) // 4, 96 << 20))

    # ---- resident parameter footprint (bf16 matmul weights, f32 scale/bias) ----
    param_bytes = 0
    for (R, W, S, Bb) in be_params:
        param_bytes += 4 * (int(np.prod(np.shape(R))) + int(np.prod(np.shape(S)))
                            + int(np.prod(np.shape(Bb))))
        param_bytes += 2 * int(np.prod(np.shape(W)))
    param_bytes += 2 * k * d_h * d_out + 4 * d_out
    param_bytes *= 2                           # pessimistic: assume double-buffered

    maxw = max(widths)

    def tile_bytes(bt):
        act = 4 * k * bt * maxw * 4            # a few live f32 activation copies
        io = 2 * 2 * bt * (d0 + d_out) * 4     # double-buffered x / out tiles
        head = bt * k * d_h * 4                # head concat scratch (f32)
        return act + io + head

    # ---- batch tile: fill the MXU M-dim, stay inside VMEM, keep grid >= 2 ----
    if batch_tile is None:
        bt = 256
        bt = min(bt, _round_up(B, 8))
        while bt > 8 and param_bytes + tile_bytes(bt) > vmem_budget:
            bt = max(8, _round_up(bt // 2, 8))
        while bt > 8 and -(-B // bt) < 2:      # give both v7x TensorCores work
            bt = max(8, _round_up(-(-bt // 2), 8))
    else:
        bt = min(_round_up(max(8, batch_tile), 8), _round_up(B, 8))

    B_pad = _round_up(B, bt)                   # zero-pad ragged batches
    x = jnp.asarray(x, jnp.float32)
    if B_pad != B:
        x = jnp.pad(x, ((0, B_pad - B), (0, 0)))

    # ---- parameters: bf16 for MXU operands, f32 for the elementwise path ----
    param_arrays = []
    for (R, W, S, Bb) in be_params:
        param_arrays += [jnp.asarray(R, jnp.float32),
                         jnp.asarray(W, jnp.bfloat16),
                         jnp.asarray(S, jnp.float32),
                         jnp.asarray(Bb, jnp.float32)]
    # Prediction heads: fold 1/k into the weights, pre-average the bias, and stack
    # per-head weights so the sum over heads becomes the matmul contraction axis.
    wh_fused = (jnp.asarray(head_w, jnp.float32) / k).reshape(k * d_h, d_out)
    bh_mean = jnp.mean(jnp.asarray(head_b, jnp.float32), axis=0, keepdims=True)
    param_arrays += [wh_fused.astype(jnp.bfloat16), bh_mean]

    grid = (B_pad // bt,)
    kernel = _make_tabm_kernel(num_be, k)

    flops = sum(2 * B_pad * k * a * b for a, b in zip(widths[:-1], widths[1:]))
    flops += 2 * B_pad * k * d_h * d_out
    bytes_accessed = B_pad * (d0 + d_out) * 4 + param_bytes // 2

    def _call(single_buffer_params):
        in_specs = [pl.BlockSpec((bt, d0), lambda i: (i, 0))]
        in_specs += [_param_spec(t.shape, single_buffer_params) for t in param_arrays]
        return pl.pallas_call(
            kernel,
            out_shape=jax.ShapeDtypeStruct((B_pad, d_out), jnp.float32),
            grid_spec=pltpu.PrefetchScalarGridSpec(
                num_scalar_prefetch=0,
                grid=grid,
                in_specs=in_specs,
                out_specs=pl.BlockSpec((bt, d_out), lambda i: (i, 0)),
                scratch_shapes=[pltpu.VMEM((bt, k * d_h), jnp.float32)],
            ),
            compiler_params=pltpu.CompilerParams(
                dimension_semantics=("parallel",),
                vmem_limit_bytes=int(vmem_budget),
            ),
            cost_estimate=pl.CostEstimate(
                flops=int(flops), transcendentals=0,
                bytes_accessed=int(bytes_accessed)),
        )(x, *param_arrays)

    try:
        out = _call(True)
    except Exception:
        out = _call(False)     # retry without single-buffered parameter blocks

    return out[:B] if B_pad != B else out


def tabm_reference(x, be_params, head_w, head_b):
    """Pure-numpy reference reproducing the PyTorch forward (eval mode)."""
    x = np.asarray(x, np.float64)
    hw = np.asarray(head_w, np.float64)
    hb = np.asarray(head_b, np.float64)
    k = hw.shape[0]
    X = np.repeat(x[:, None, :], k, axis=1)                      # (B, k, d0)
    for (R, W, S, Bb) in be_params:
        R, W, S, Bb = (np.asarray(t, np.float64) for t in (R, W, S, Bb))
        X = X * R[None]
        X = np.einsum('bki,io->bko', X, W)
        X = X * S[None] + Bb[None]
        X = np.maximum(X, 0.0)                                   # ReLU (dropout=id)
    preds = np.einsum('bkd,kdo->bko', X, hw) + hb[None]
    return preds.mean(axis=1).astype(np.float32)                 # mean_over_heads


if __name__ == "__main__":
    # Small, deterministic example consistent with TabM_Naive:
    #   layers_shapes = [16, 32, 32, 8]  ->  2 LinearBE layers + k pred heads
    layers_shapes = [16, 32, 32, 8]
    k = 8
    batch = 16

    def bf16_round(t):      # kernel runs its matmul weights in bf16
        return jnp.asarray(t, jnp.float32).astype(jnp.bfloat16).astype(jnp.float32)

    keys = jax.random.split(jax.random.PRNGKey(0), 16)
    x = jax.random.normal(keys[0], (batch, layers_shapes[0]), dtype=jnp.float32)

    be_params = []
    ki = 1
    for i in range(len(layers_shapes) - 2):
        d_in, d_mid = layers_shapes[i], layers_shapes[i + 1]
        R = jax.random.uniform(keys[ki], (k, d_in), minval=-1.0, maxval=1.0); ki += 1
        W = bf16_round(jax.random.normal(keys[ki], (d_in, d_mid))); ki += 1
        S = jax.random.uniform(keys[ki], (k, d_mid), minval=-1.0, maxval=1.0); ki += 1
        Bb = jax.random.normal(keys[ki], (k, d_mid)); ki += 1
        be_params.append((R, W, S, Bb))

    d_h, d_out = layers_shapes[-2], layers_shapes[-1]
    head_w = bf16_round(jax.random.normal(keys[ki], (k, d_h, d_out)) / jnp.sqrt(d_h)); ki += 1
    head_b = jax.random.normal(keys[ki], (k, d_out)) * 0.1; ki += 1

    out = tabm_naive_forward(x, be_params, head_w, head_b)
    out = jax.block_until_ready(out)
    assert out.shape == (batch, d_out), out.shape

    ref = tabm_reference(np.asarray(x), be_params, head_w, head_b)
    np.testing.assert_allclose(np.asarray(out), ref, rtol=5e-2, atol=5e-2)

    print("KERNEL_OK")
</pallas_src>

<mosaic_0001>
module attributes {stable_mosaic.version = 11 : i64} {
  func.func @kernel(%arg0: i32, %arg1: memref<8x16xf32, #tpu.memory_space<vmem>>, %arg2: memref<8x16xf32, #tpu.memory_space<vmem>>, %arg3: memref<16x32xbf16, #tpu.memory_space<vmem>>, %arg4: memref<8x32xf32, #tpu.memory_space<vmem>>, %arg5: memref<8x32xf32, #tpu.memory_space<vmem>>, %arg6: memref<8x32xf32, #tpu.memory_space<vmem>>, %arg7: memref<32x32xbf16, #tpu.memory_space<vmem>>, %arg8: memref<8x32xf32, #tpu.memory_space<vmem>>, %arg9: memref<8x32xf32, #tpu.memory_space<vmem>>, %arg10: memref<256x8xbf16, #tpu.memory_space<vmem>>, %arg11: memref<1x8xf32, #tpu.memory_space<vmem>>, %arg12: memref<8x8xf32, #tpu.memory_space<vmem>>, %arg13: memref<8x256xf32, #tpu.memory_space<vmem>>) attributes {dimension_semantics = [#tpu.dimension_semantics<parallel>], iteration_bounds = array<i64: 2>, scalar_prefetch = 0 : i64, scratch_operands = 1 : i64, tpu.core_type = #tpu.core_type<tc>, window_params = [{transform_indices = @transform_0, window_bounds = array<i64: 8, 16>}, {pipeline_mode = #tpu.pipeline_mode<synchronous>, transform_indices = @transform_1, window_bounds = array<i64: 8, 16>}, {pipeline_mode = #tpu.pipeline_mode<synchronous>, transform_indices = @transform_2, window_bounds = array<i64: 16, 32>}, {pipeline_mode = #tpu.pipeline_mode<synchronous>, transform_indices = @transform_3, window_bounds = array<i64: 8, 32>}, {pipeline_mode = #tpu.pipeline_mode<synchronous>, transform_indices = @transform_4, window_bounds = array<i64: 8, 32>}, {pipeline_mode = #tpu.pipeline_mode<synchronous>, transform_indices = @transform_5, window_bounds = array<i64: 8, 32>}, {pipeline_mode = #tpu.pipeline_mode<synchronous>, transform_indices = @transform_6, window_bounds = array<i64: 32, 32>}, {pipeline_mode = #tpu.pipeline_mode<synchronous>, transform_indices = @transform_7, window_bounds = array<i64: 8, 32>}, {pipeline_mode = #tpu.pipeline_mode<synchronous>, transform_indices = @transform_8, window_bounds = array<i64: 8, 32>}, {pipeline_mode = #tpu.pipeline_mode<synchronous>, transform_indices = @transform_9, window_bounds = array<i64: 256, 8>}, {pipeline_mode = #tpu.pipeline_mode<synchronous>, transform_indices = @transform_10, window_bounds = array<i64: 1, 8>}, {transform_indices = @transform_11, window_bounds = array<i64: 8, 8>}]} {
    %c0 = arith.constant 0 : index
    %c0_0 = arith.constant 0 : index
    %0 = vector.load %arg1[%c0, %c0_0] : memref<8x16xf32, #tpu.memory_space<vmem>>, vector<8x16xf32>
    %c0_1 = arith.constant 0 : index
    %c0_2 = arith.constant 0 : index
    %1 = vector.load %arg2[%c0_1, %c0_2] : memref<8x16xf32, #tpu.memory_space<vmem>>, vector<8x16xf32>
    %2 = vector.shape_cast %0 : vector<8x16xf32> to vector<1x8x16xf32>
    %3 = vector.shape_cast %1 : vector<8x16xf32> to vector<8x1x16xf32>
    %4 = vector.broadcast %2 : vector<1x8x16xf32> to vector<8x8x16xf32>
    %5 = vector.broadcast %3 : vector<8x1x16xf32> to vector<8x8x16xf32>
    %6 = arith.mulf %4, %5 : vector<8x8x16xf32>
    %7 = vector.shape_cast %6 : vector<8x8x16xf32> to vector<64x16xf32>
    %8 = arith.truncf %7 : vector<64x16xf32> to vector<64x16xbf16>
    %c0_3 = arith.constant 0 : index
    %c0_4 = arith.constant 0 : index
    %9 = vector.load %arg3[%c0_3, %c0_4] : memref<16x32xbf16, #tpu.memory_space<vmem>>, vector<16x32xbf16>
    %cst = arith.constant dense<0.000000e+00> : vector<64x32xf32>
    %10 = tpu.matmul %8, %9, %cst {dimension_numbers = #tpu.dot_dimension_numbers<[1], [0], [0], [1], [0, 0, 1, 1], [], []>} : vector<64x16xbf16>, vector<16x32xbf16>, vector<64x32xf32> -> vector<64x32xf32>
    %11 = vector.shape_cast %10 : vector<64x32xf32> to vector<8x8x32xf32>
    %c0_5 = arith.constant 0 : index
    %c0_6 = arith.constant 0 : index
    %12 = vector.load %arg4[%c0_5, %c0_6] : memref<8x32xf32, #tpu.memory_space<vmem>>, vector<8x32xf32>
    %13 = vector.shape_cast %12 : vector<8x32xf32> to vector<8x1x32xf32>
    %14 = vector.broadcast %13 : vector<8x1x32xf32> to vector<8x8x32xf32>
    %15 = arith.mulf %11, %14 : vector<8x8x32xf32>
    %c0_7 = arith.constant 0 : index
    %c0_8 = arith.constant 0 : index
    %16 = vector.load %arg5[%c0_7, %c0_8] : memref<8x32xf32, #tpu.memory_space<vmem>>, vector<8x32xf32>
    %17 = vector.shape_cast %16 : vector<8x32xf32> to vector<8x1x32xf32>
    %18 = vector.broadcast %17 : vector<8x1x32xf32> to vector<8x8x32xf32>
    %19 = arith.addf %15, %18 : vector<8x8x32xf32>
    %cst_9 = arith.constant 0.000000e+00 : f32
    %20 = vector.broadcast %cst_9 : f32 to vector<8x8x32xf32>
    %21 = arith.maximumf %19, %20 : vector<8x8x32xf32>
    %c0_10 = arith.constant 0 : index
    %c0_11 = arith.constant 0 : index
    %22 = vector.load %arg6[%c0_10, %c0_11] : memref<8x32xf32, #tpu.memory_space<vmem>>, vector<8x32xf32>
    %23 = vector.shape_cast %22 : vector<8x32xf32> to vector<8x1x32xf32>
    %24 = vector.broadcast %23 : vector<8x1x32xf32> to vector<8x8x32xf32>
    %25 = arith.mulf %21, %24 : vector<8x8x32xf32>
    %26 = vector.shape_cast %25 : vector<8x8x32xf32> to vector<64x32xf32>
    %27 = arith.truncf %26 : vector<64x32xf32> to vector<64x32xbf16>
    %c0_12 = arith.constant 0 : index
    %c0_13 = arith.constant 0 : index
    %28 = vector.load %arg7[%c0_12, %c0_13] : memref<32x32xbf16, #tpu.memory_space<vmem>>, vector<32x32xbf16>
    %cst_14 = arith.constant dense<0.000000e+00> : vector<64x32xf32>
    %29 = tpu.matmul %27, %28, %cst_14 {dimension_numbers = #tpu.dot_dimension_numbers<[1], [0], [0], [1], [0, 0, 1, 1], [], []>} : vector<64x32xbf16>, vector<32x32xbf16>, vector<64x32xf32> -> vector<64x32xf32>
    %30 = vector.shape_cast %29 : vector<64x32xf32> to vector<8x8x32xf32>
    %c0_15 = arith.constant 0 : index
    %c0_16 = arith.constant 0 : index
    %31 = vector.load %arg8[%c0_15, %c0_16] : memref<8x32xf32, #tpu.memory_space<vmem>>, vector<8x32xf32>
    %32 = vector.shape_cast %31 : vector<8x32xf32> to vector<8x1x32xf32>
    %33 = vector.broadcast %32 : vector<8x1x32xf32> to vector<8x8x32xf32>
    %34 = arith.mulf %30, %33 : vector<8x8x32xf32>
    %c0_17 = arith.constant 0 : index
    %c0_18 = arith.constant 0 : index
    %35 = vector.load %arg9[%c0_17, %c0_18] : memref<8x32xf32, #tpu.memory_space<vmem>>, vector<8x32xf32>
    %36 = vector.shape_cast %35 : vector<8x32xf32> to vector<8x1x32xf32>
    %37 = vector.broadcast %36 : vector<8x1x32xf32> to vector<8x8x32xf32>
    %38 = arith.addf %34, %37 : vector<8x8x32xf32>
    %cst_19 = arith.constant 0.000000e+00 : f32
    %39 = vector.broadcast %cst_19 : f32 to vector<8x8x32xf32>
    %40 = arith.maximumf %38, %39 : vector<8x8x32xf32>
    %41 = vector.extract_strided_slice %40 {offsets = [0, 0, 0], sizes = [1, 8, 32], strides = [1, 1, 1]} : vector<8x8x32xf32> to vector<1x8x32xf32>
    %42 = vector.shape_cast %41 : vector<1x8x32xf32> to vector<8x32xf32>
    %c0_20 = arith.constant 0 : index
    %c0_21 = arith.constant 0 : index
    %43 = vector.load %arg13[%c0_20, %c0_21] : memref<8x256xf32, #tpu.memory_space<vmem>>, vector<8x32xf32>
    tpu.vector_store %arg13[%c0_20, %c0_21], %42 {strides = array<i32>} : memref<8x256xf32, #tpu.memory_space<vmem>>, vector<8x32xf32>,
    %44 = vector.extract_strided_slice %40 {offsets = [1, 0, 0], sizes = [1, 8, 32], strides = [1, 1, 1]} : vector<8x8x32xf32> to vector<1x8x32xf32>
    %45 = vector.shape_cast %44 : vector<1x8x32xf32> to vector<8x32xf32>
    %c0_22 = arith.constant 0 : index
    %c32 = arith.constant 32 : index
    %46 = vector.load %arg13[%c0_22, %c32] : memref<8x256xf32, #tpu.memory_space<vmem>>, vector<8x32xf32>
    tpu.vector_store %arg13[%c0_22, %c32], %45 {strides = array<i32>} : memref<8x256xf32, #tpu.memory_space<vmem>>, vector<8x32xf32>,
    %47 = vector.extract_strided_slice %40 {offsets = [2, 0, 0], sizes = [1, 8, 32], strides = [1, 1, 1]} : vector<8x8x32xf32> to vector<1x8x32xf32>
    %48 = vector.shape_cast %47 : vector<1x8x32xf32> to vector<8x32xf32>
    %c0_23 = arith.constant 0 : index
    %c64 = arith.constant 64 : index
    %49 = vector.load %arg13[%c0_23, %c64] : memref<8x256xf32, #tpu.memory_space<vmem>>, vector<8x32xf32>
    tpu.vector_store %arg13[%c0_23, %c64], %48 {strides = array<i32>} : memref<8x256xf32, #tpu.memory_space<vmem>>, vector<8x32xf32>,
    %50 = vector.extract_strided_slice %40 {offsets = [3, 0, 0], sizes = [1, 8, 32], strides = [1, 1, 1]} : vector<8x8x32xf32> to vector<1x8x32xf32>
    %51 = vector.shape_cast %50 : vector<1x8x32xf32> to vector<8x32xf32>
    %c0_24 = arith.constant 0 : index
    %c96 = arith.constant 96 : index
    %52 = vector.load %arg13[%c0_24, %c96] : memref<8x256xf32, #tpu.memory_space<vmem>>, vector<8x32xf32>
    tpu.vector_store %arg13[%c0_24, %c96], %51 {strides = array<i32>} : memref<8x256xf32, #tpu.memory_space<vmem>>, vector<8x32xf32>,
    %53 = vector.extract_strided_slice %40 {offsets = [4, 0, 0], sizes = [1, 8, 32], strides = [1, 1, 1]} : vector<8x8x32xf32> to vector<1x8x32xf32>
    %54 = vector.shape_cast %53 : vector<1x8x32xf32> to vector<8x32xf32>
    %c0_25 = arith.constant 0 : index
    %c128 = arith.constant 128 : index
    %55 = vector.load %arg13[%c0_25, %c128] : memref<8x256xf32, #tpu.memory_space<vmem>>, vector<8x32xf32>
    tpu.vector_store %arg13[%c0_25, %c128], %54 {strides = array<i32>} : memref<8x256xf32, #tpu.memory_space<vmem>>, vector<8x32xf32>,
    %56 = vector.extract_strided_slice %40 {offsets = [5, 0, 0], sizes = [1, 8, 32], strides = [1, 1, 1]} : vector<8x8x32xf32> to vector<1x8x32xf32>
    %57 = vector.shape_cast %56 : vector<1x8x32xf32> to vector<8x32xf32>
    %c0_26 = arith.constant 0 : index
    %c160 = arith.constant 160 : index
    %58 = vector.load %arg13[%c0_26, %c160] : memref<8x256xf32, #tpu.memory_space<vmem>>, vector<8x32xf32>
    tpu.vector_store %arg13[%c0_26, %c160], %57 {strides = array<i32>} : memref<8x256xf32, #tpu.memory_space<vmem>>, vector<8x32xf32>,
    %59 = vector.extract_strided_slice %40 {offsets = [6, 0, 0], sizes = [1, 8, 32], strides = [1, 1, 1]} : vector<8x8x32xf32> to vector<1x8x32xf32>
    %60 = vector.shape_cast %59 : vector<1x8x32xf32> to vector<8x32xf32>
    %c0_27 = arith.constant 0 : index
    %c192 = arith.constant 192 : index
    %61 = vector.load %arg13[%c0_27, %c192] : memref<8x256xf32, #tpu.memory_space<vmem>>, vector<8x32xf32>
    tpu.vector_store %arg13[%c0_27, %c192], %60 {strides = array<i32>} : memref<8x256xf32, #tpu.memory_space<vmem>>, vector<8x32xf32>,
    %62 = vector.extract_strided_slice %40 {offsets = [7, 0, 0], sizes = [1, 8, 32], strides = [1, 1, 1]} : vector<8x8x32xf32> to vector<1x8x32xf32>
    %63 = vector.shape_cast %62 : vector<1x8x32xf32> to vector<8x32xf32>
    %c0_28 = arith.constant 0 : index
    %c224 = arith.constant 224 : index
    %64 = vector.load %arg13[%c0_28, %c224] : memref<8x256xf32, #tpu.memory_space<vmem>>, vector<8x32xf32>
    tpu.vector_store %arg13[%c0_28, %c224], %63 {strides = array<i32>} : memref<8x256xf32, #tpu.memory_space<vmem>>, vector<8x32xf32>,
    %c0_29 = arith.constant 0 : index
    %c0_30 = arith.constant 0 : index
    %65 = vector.load %arg13[%c0_29, %c0_30] : memref<8x256xf32, #tpu.memory_space<vmem>>, vector<8x256xf32>
    %66 = arith.truncf %65 : vector<8x256xf32> to vector<8x256xbf16>
    %c0_31 = arith.constant 0 : index
    %c0_32 = arith.constant 0 : index
    %67 = vector.load %arg10[%c0_31, %c0_32] : memref<256x8xbf16, #tpu.memory_space<vmem>>, vector<256x8xbf16>
    %cst_33 = arith.constant dense<0.000000e+00> : vector<8x8xf32>
    %68 = tpu.matmul %66, %67, %cst_33 {dimension_numbers = #tpu.dot_dimension_numbers<[1], [0], [0], [1], [0, 0, 1, 1], [], []>} : vector<8x256xbf16>, vector<256x8xbf16>, vector<8x8xf32> -> vector<8x8xf32>
    %c0_34 = arith.constant 0 : index
    %c0_35 = arith.constant 0 : index
    %69 = vector.load %arg11[%c0_34, %c0_35] : memref<1x8xf32, #tpu.memory_space<vmem>>, vector<1x8xf32>
    %70 = vector.broadcast %69 : vector<1x8xf32> to vector<8x8xf32>
    %71 = arith.addf %68, %70 : vector<8x8xf32>
    %c0_36 = arith.constant 0 : index
    %c0_37 = arith.constant 0 : index
    %72 = vector.load %arg12[%c0_36, %c0_37] : memref<8x8xf32, #tpu.memory_space<vmem>>, vector<8x8xf32>
    tpu.vector_store %arg12[%c0_36, %c0_37], %71 {strides = array<i32>} : memref<8x8xf32, #tpu.memory_space<vmem>>, vector<8x8xf32>,
    return
  }
  func.func @transform_0(%arg0: i32) -> (i32, i32) {
    %c0_i32 = arith.constant 0 : i32
    %c0_i32_0 = arith.constant 0 : i32
    return %arg0, %c0_i32 : i32, i32
  }
  func.func @transform_1(%arg0: i32) -> (i32, i32) {
    %c0_i32 = arith.constant 0 : i32
    %c0_i32_0 = arith.constant 0 : i32
    %c0_i32_1 = arith.constant 0 : i32
    return %c0_i32, %c0_i32_0 : i32, i32
  }
  func.func @transform_2(%arg0: i32) -> (i32, i32) {
    %c0_i32 = arith.constant 0 : i32
    %c0_i32_0 = arith.constant 0 : i32
    %c0_i32_1 = arith.constant 0 : i32
    return %c0_i32, %c0_i32_0 : i32, i32
  }
  func.func @transform_3(%arg0: i32) -> (i32, i32) {
    %c0_i32 = arith.constant 0 : i32
    %c0_i32_0 = arith.constant 0 : i32
    %c0_i32_1 = arith.constant 0 : i32
    return %c0_i32, %c0_i32_0 : i32, i32
  }
  func.func @transform_4(%arg0: i32) -> (i32, i32) {
    %c0_i32 = arith.constant 0 : i32
    %c0_i32_0 = arith.constant 0 : i32
    %c0_i32_1 = arith.constant 0 : i32
    return %c0_i32, %c0_i32_0 : i32, i32
  }
  func.func @transform_5(%arg0: i32) -> (i32, i32) {
    %c0_i32 = arith.constant 0 : i32
    %c0_i32_0 = arith.constant 0 : i32
    %c0_i32_1 = arith.constant 0 : i32
    return %c0_i32, %c0_i32_0 : i32, i32
  }
  func.func @transform_6(%arg0: i32) -> (i32, i32) {
    %c0_i32 = arith.constant 0 : i32
    %c0_i32_0 = arith.constant 0 : i32
    %c0_i32_1 = arith.constant 0 : i32
    return %c0_i32, %c0_i32_0 : i32, i32
  }
  func.func @transform_7(%arg0: i32) -> (i32, i32) {
    %c0_i32 = arith.constant 0 : i32
    %c0_i32_0 = arith.constant 0 : i32
    %c0_i32_1 = arith.constant 0 : i32
    return %c0_i32, %c0_i32_0 : i32, i32
  }
  func.func @transform_8(%arg0: i32) -> (i32, i32) {
    %c0_i32 = arith.constant 0 : i32
    %c0_i32_0 = arith.constant 0 : i32
    %c0_i32_1 = arith.constant 0 : i32
    return %c0_i32, %c0_i32_0 : i32, i32
  }
  func.func @transform_9(%arg0: i32) -> (i32, i32) {
    %c0_i32 = arith.constant 0 : i32
    %c0_i32_0 = arith.constant 0 : i32
    %c0_i32_1 = arith.constant 0 : i32
    return %c0_i32, %c0_i32_0 : i32, i32
  }
  func.func @transform_10(%arg0: i32) -> (i32, i32) {
    %c0_i32 = arith.constant 0 : i32
    %c0_i32_0 = arith.constant 0 : i32
    %c0_i32_1 = arith.constant 0 : i32
    return %c0_i32, %c0_i32_0 : i32, i32
  }
  func.func @transform_11(%arg0: i32) -> (i32, i32) {
    %c0_i32 = arith.constant 0 : i32
    %c0_i32_0 = arith.constant 0 : i32
    return %arg0, %c0_i32 : i32, i32
  }
}

module attributes {stable_mosaic.version = 11 : i64} {
  func.func @kernel(%arg0: i32, %arg1: memref<8x16xf32, #tpu.memory_space<vmem>>, %arg2: memref<8x16xf32, #tpu.memory_space<vmem>>, %arg3: memref<16x32xbf16, #tpu.memory_space<vmem>>, %arg4: memref<8x32xf32, #tpu.memory_space<vmem>>, %arg5: memref<8x32xf32, #tpu.memory_space<vmem>>, %arg6: memref<8x32xf32, #tpu.memory_space<vmem>>, %arg7: memref<32x32xbf16, #tpu.memory_space<vmem>>, %arg8: memref<8x32xf32, #tpu.memory_space<vmem>>, %arg9: memref<8x32xf32, #tpu.memory_space<vmem>>, %arg10: memref<256x8xbf16, #tpu.memory_space<vmem>>, %arg11: memref<1x8xf32, #tpu.memory_space<vmem>>, %arg12: memref<8x8xf32, #tpu.memory_space<vmem>>, %arg13: memref<8x256xf32, #tpu.memory_space<vmem>>) attributes {dimension_semantics = [#tpu.dimension_semantics<parallel>], iteration_bounds = array<i64: 2>, scalar_prefetch = 0 : i64, scratch_operands = 1 : i64, tpu.core_type = #tpu.core_type<tc>, window_params = [{transform_indices = @transform_0, window_bounds = array<i64: 8, 16>}, {pipeline_mode = #tpu.pipeline_mode<synchronous>, transform_indices = @transform_1, window_bounds = array<i64: 8, 16>}, {pipeline_mode = #tpu.pipeline_mode<synchronous>, transform_indices = @transform_2, window_bounds = array<i64: 16, 32>}, {pipeline_mode = #tpu.pipeline_mode<synchronous>, transform_indices = @transform_3, window_bounds = array<i64: 8, 32>}, {pipeline_mode = #tpu.pipeline_mode<synchronous>, transform_indices = @transform_4, window_bounds = array<i64: 8, 32>}, {pipeline_mode = #tpu.pipeline_mode<synchronous>, transform_indices = @transform_5, window_bounds = array<i64: 8, 32>}, {pipeline_mode = #tpu.pipeline_mode<synchronous>, transform_indices = @transform_6, window_bounds = array<i64: 32, 32>}, {pipeline_mode = #tpu.pipeline_mode<synchronous>, transform_indices = @transform_7, window_bounds = array<i64: 8, 32>}, {pipeline_mode = #tpu.pipeline_mode<synchronous>, transform_indices = @transform_8, window_bounds = array<i64: 8, 32>}, {pipeline_mode = #tpu.pipeline_mode<synchronous>, transform_indices = @transform_9, window_bounds = array<i64: 256, 8>}, {pipeline_mode = #tpu.pipeline_mode<synchronous>, transform_indices = @transform_10, window_bounds = array<i64: 1, 8>}, {transform_indices = @transform_11, window_bounds = array<i64: 8, 8>}]} {
    %c0 = arith.constant 0 : index
    %c0_0 = arith.constant 0 : index
    %0 = vector.load %arg1[%c0, %c0_0] : memref<8x16xf32, #tpu.memory_space<vmem>>, vector<8x16xf32>
    %c0_1 = arith.constant 0 : index
    %c0_2 = arith.constant 0 : index
    %1 = vector.load %arg2[%c0_1, %c0_2] : memref<8x16xf32, #tpu.memory_space<vmem>>, vector<8x16xf32>
    %2 = vector.shape_cast %0 : vector<8x16xf32> to vector<1x8x16xf32>
    %3 = vector.shape_cast %1 : vector<8x16xf32> to vector<8x1x16xf32>
    %4 = vector.broadcast %2 : vector<1x8x16xf32> to vector<8x8x16xf32>
    %5 = vector.broadcast %3 : vector<8x1x16xf32> to vector<8x8x16xf32>
    %6 = arith.mulf %4, %5 : vector<8x8x16xf32>
    %7 = vector.shape_cast %6 : vector<8x8x16xf32> to vector<64x16xf32>
    %8 = arith.truncf %7 : vector<64x16xf32> to vector<64x16xbf16>
    %c0_3 = arith.constant 0 : index
    %c0_4 = arith.constant 0 : index
    %9 = vector.load %arg3[%c0_3, %c0_4] : memref<16x32xbf16, #tpu.memory_space<vmem>>, vector<16x32xbf16>
    %cst = arith.constant dense<0.000000e+00> : vector<64x32xf32>
    %10 = tpu.matmul %8, %9, %cst {dimension_numbers = #tpu.dot_dimension_numbers<[1], [0], [0], [1], [0, 0, 1, 1], [], []>} : vector<64x16xbf16>, vector<16x32xbf16>, vector<64x32xf32> -> vector<64x32xf32>
    %11 = vector.shape_cast %10 : vector<64x32xf32> to vector<8x8x32xf32>
    %c0_5 = arith.constant 0 : index
    %c0_6 = arith.constant 0 : index
    %12 = vector.load %arg4[%c0_5, %c0_6] : memref<8x32xf32, #tpu.memory_space<vmem>>, vector<8x32xf32>
    %13 = vector.shape_cast %12 : vector<8x32xf32> to vector<8x1x32xf32>
    %14 = vector.broadcast %13 : vector<8x1x32xf32> to vector<8x8x32xf32>
    %15 = arith.mulf %11, %14 : vector<8x8x32xf32>
    %c0_7 = arith.constant 0 : index
    %c0_8 = arith.constant 0 : index
    %16 = vector.load %arg5[%c0_7, %c0_8] : memref<8x32xf32, #tpu.memory_space<vmem>>, vector<8x32xf32>
    %17 = vector.shape_cast %16 : vector<8x32xf32> to vector<8x1x32xf32>
    %18 = vector.broadcast %17 : vector<8x1x32xf32> to vector<8x8x32xf32>
    %19 = arith.addf %15, %18 : vector<8x8x32xf32>
    %cst_9 = arith.constant 0.000000e+00 : f32
    %20 = vector.broadcast %cst_9 : f32 to vector<8x8x32xf32>
    %21 = arith.maximumf %19, %20 : vector<8x8x32xf32>
    %c0_10 = arith.constant 0 : index
    %c0_11 = arith.constant 0 : index
    %22 = vector.load %arg6[%c0_10, %c0_11] : memref<8x32xf32, #tpu.memory_space<vmem>>, vector<8x32xf32>
    %23 = vector.shape_cast %22 : vector<8x32xf32> to vector<8x1x32xf32>
    %24 = vector.broadcast %23 : vector<8x1x32xf32> to vector<8x8x32xf32>
    %25 = arith.mulf %21, %24 : vector<8x8x32xf32>
    %26 = vector.shape_cast %25 : vector<8x8x32xf32> to vector<64x32xf32>
    %27 = arith.truncf %26 : vector<64x32xf32> to vector<64x32xbf16>
    %c0_12 = arith.constant 0 : index
    %c0_13 = arith.constant 0 : index
    %28 = vector.load %arg7[%c0_12, %c0_13] : memref<32x32xbf16, #tpu.memory_space<vmem>>, vector<32x32xbf16>
    %cst_14 = arith.constant dense<0.000000e+00> : vector<64x32xf32>
    %29 = tpu.matmul %27, %28, %cst_14 {dimension_numbers = #tpu.dot_dimension_numbers<[1], [0], [0], [1], [0, 0, 1, 1], [], []>} : vector<64x32xbf16>, vector<32x32xbf16>, vector<64x32xf32> -> vector<64x32xf32>
    %30 = vector.shape_cast %29 : vector<64x32xf32> to vector<8x8x32xf32>
    %c0_15 = arith.constant 0 : index
    %c0_16 = arith.constant 0 : index
    %31 = vector.load %arg8[%c0_15, %c0_16] : memref<8x32xf32, #tpu.memory_space<vmem>>, vector<8x32xf32>
    %32 = vector.shape_cast %31 : vector<8x32xf32> to vector<8x1x32xf32>
    %33 = vector.broadcast %32 : vector<8x1x32xf32> to vector<8x8x32xf32>
    %34 = arith.mulf %30, %33 : vector<8x8x32xf32>
    %c0_17 = arith.constant 0 : index
    %c0_18 = arith.constant 0 : index
    %35 = vector.load %arg9[%c0_17, %c0_18] : memref<8x32xf32, #tpu.memory_space<vmem>>, vector<8x32xf32>
    %36 = vector.shape_cast %35 : vector<8x32xf32> to vector<8x1x32xf32>
    %37 = vector.broadcast %36 : vector<8x1x32xf32> to vector<8x8x32xf32>
    %38 = arith.addf %34, %37 : vector<8x8x32xf32>
    %cst_19 = arith.constant 0.000000e+00 : f32
    %39 = vector.broadcast %cst_19 : f32 to vector<8x8x32xf32>
    %40 = arith.maximumf %38, %39 : vector<8x8x32xf32>
    %41 = vector.extract_strided_slice %40 {offsets = [0, 0, 0], sizes = [1, 8, 32], strides = [1, 1, 1]} : vector<8x8x32xf32> to vector<1x8x32xf32>
    %42 = vector.shape_cast %41 : vector<1x8x32xf32> to vector<8x32xf32>
    %c0_20 = arith.constant 0 : index
    %c0_21 = arith.constant 0 : index
    %43 = vector.load %arg13[%c0_20, %c0_21] : memref<8x256xf32, #tpu.memory_space<vmem>>, vector<8x32xf32>
    tpu.vector_store %arg13[%c0_20, %c0_21], %42 {strides = array<i32>} : memref<8x256xf32, #tpu.memory_space<vmem>>, vector<8x32xf32>,
    %44 = vector.extract_strided_slice %40 {offsets = [1, 0, 0], sizes = [1, 8, 32], strides = [1, 1, 1]} : vector<8x8x32xf32> to vector<1x8x32xf32>
    %45 = vector.shape_cast %44 : vector<1x8x32xf32> to vector<8x32xf32>
    %c0_22 = arith.constant 0 : index
    %c32 = arith.constant 32 : index
    %46 = vector.load %arg13[%c0_22, %c32] : memref<8x256xf32, #tpu.memory_space<vmem>>, vector<8x32xf32>
    tpu.vector_store %arg13[%c0_22, %c32], %45 {strides = array<i32>} : memref<8x256xf32, #tpu.memory_space<vmem>>, vector<8x32xf32>,
    %47 = vector.extract_strided_slice %40 {offsets = [2, 0, 0], sizes = [1, 8, 32], strides = [1, 1, 1]} : vector<8x8x32xf32> to vector<1x8x32xf32>
    %48 = vector.shape_cast %47 : vector<1x8x32xf32> to vector<8x32xf32>
    %c0_23 = arith.constant 0 : index
    %c64 = arith.constant 64 : index
    %49 = vector.load %arg13[%c0_23, %c64] : memref<8x256xf32, #tpu.memory_space<vmem>>, vector<8x32xf32>
    tpu.vector_store %arg13[%c0_23, %c64], %48 {strides = array<i32>} : memref<8x256xf32, #tpu.memory_space<vmem>>, vector<8x32xf32>,
    %50 = vector.extract_strided_slice %40 {offsets = [3, 0, 0], sizes = [1, 8, 32], strides = [1, 1, 1]} : vector<8x8x32xf32> to vector<1x8x32xf32>
    %51 = vector.shape_cast %50 : vector<1x8x32xf32> to vector<8x32xf32>
    %c0_24 = arith.constant 0 : index
    %c96 = arith.constant 96 : index
    %52 = vector.load %arg13[%c0_24, %c96] : memref<8x256xf32, #tpu.memory_space<vmem>>, vector<8x32xf32>
    tpu.vector_store %arg13[%c0_24, %c96], %51 {strides = array<i32>} : memref<8x256xf32, #tpu.memory_space<vmem>>, vector<8x32xf32>,
    %53 = vector.extract_strided_slice %40 {offsets = [4, 0, 0], sizes = [1, 8, 32], strides = [1, 1, 1]} : vector<8x8x32xf32> to vector<1x8x32xf32>
    %54 = vector.shape_cast %53 : vector<1x8x32xf32> to vector<8x32xf32>
    %c0_25 = arith.constant 0 : index
    %c128 = arith.constant 128 : index
    %55 = vector.load %arg13[%c0_25, %c128] : memref<8x256xf32, #tpu.memory_space<vmem>>, vector<8x32xf32>
    tpu.vector_store %arg13[%c0_25, %c128], %54 {strides = array<i32>} : memref<8x256xf32, #tpu.memory_space<vmem>>, vector<8x32xf32>,
    %56 = vector.extract_strided_slice %40 {offsets = [5, 0, 0], sizes = [1, 8, 32], strides = [1, 1, 1]} : vector<8x8x32xf32> to vector<1x8x32xf32>
    %57 = vector.shape_cast %56 : vector<1x8x32xf32> to vector<8x32xf32>
    %c0_26 = arith.constant 0 : index
    %c160 = arith.constant 160 : index
    %58 = vector.load %arg13[%c0_26, %c160] : memref<8x256xf32, #tpu.memory_space<vmem>>, vector<8x32xf32>
    tpu.vector_store %arg13[%c0_26, %c160], %57 {strides = array<i32>} : memref<8x256xf32, #tpu.memory_space<vmem>>, vector<8x32xf32>,
    %59 = vector.extract_strided_slice %40 {offsets = [6, 0, 0], sizes = [1, 8, 32], strides = [1, 1, 1]} : vector<8x8x32xf32> to vector<1x8x32xf32>
    %60 = vector.shape_cast %59 : vector<1x8x32xf32> to vector<8x32xf32>
    %c0_27 = arith.constant 0 : index
    %c192 = arith.constant 192 : index
    %61 = vector.load %arg13[%c0_27, %c192] : memref<8x256xf32, #tpu.memory_space<vmem>>, vector<8x32xf32>
    tpu.vector_store %arg13[%c0_27, %c192], %60 {strides = array<i32>} : memref<8x256xf32, #tpu.memory_space<vmem>>, vector<8x32xf32>,
    %62 = vector.extract_strided_slice %40 {offsets = [7, 0, 0], sizes = [1, 8, 32], strides = [1, 1, 1]} : vector<8x8x32xf32> to vector<1x8x32xf32>
    %63 = vector.shape_cast %62 : vector<1x8x32xf32> to vector<8x32xf32>
    %c0_28 = arith.constant 0 : index
    %c224 = arith.constant 224 : index
    %64 = vector.load %arg13[%c0_28, %c224] : memref<8x256xf32, #tpu.memory_space<vmem>>, vector<8x32xf32>
    tpu.vector_store %arg13[%c0_28, %c224], %63 {strides = array<i32>} : memref<8x256xf32, #tpu.memory_space<vmem>>, vector<8x32xf32>,
    %c0_29 = arith.constant 0 : index
    %c0_30 = arith.constant 0 : index
    %65 = vector.load %arg13[%c0_29, %c0_30] : memref<8x256xf32, #tpu.memory_space<vmem>>, vector<8x256xf32>
    %66 = arith.truncf %65 : vector<8x256xf32> to vector<8x256xbf16>
    %c0_31 = arith.constant 0 : index
    %c0_32 = arith.constant 0 : index
    %67 = vector.load %arg10[%c0_31, %c0_32] : memref<256x8xbf16, #tpu.memory_space<vmem>>, vector<256x8xbf16>
    %cst_33 = arith.constant dense<0.000000e+00> : vector<8x8xf32>
    %68 = tpu.matmul %66, %67, %cst_33 {dimension_numbers = #tpu.dot_dimension_numbers<[1], [0], [0], [1], [0, 0, 1, 1], [], []>} : vector<8x256xbf16>, vector<256x8xbf16>, vector<8x8xf32> -> vector<8x8xf32>
    %c0_34 = arith.constant 0 : index
    %c0_35 = arith.constant 0 : index
    %69 = vector.load %arg11[%c0_34, %c0_35] : memref<1x8xf32, #tpu.memory_space<vmem>>, vector<1x8xf32>
    %70 = vector.broadcast %69 : vector<1x8xf32> to vector<8x8xf32>
    %71 = arith.addf %68, %70 : vector<8x8xf32>
    %c0_36 = arith.constant 0 : index
    %c0_37 = arith.constant 0 : index
    %72 = vector.load %arg12[%c0_36, %c0_37] : memref<8x8xf32, #tpu.memory_space<vmem>>, vector<8x8xf32>
    tpu.vector_store %arg12[%c0_36, %c0_37], %71 {strides = array<i32>} : memref<8x8xf32, #tpu.memory_space<vmem>>, vector<8x8xf32>,
    return
  }
  func.func @transform_0(%arg0: i32) -> (i32, i32) {
    %c0_i32 = arith.constant 0 : i32
    %c0_i32_0 = arith.constant 0 : i32
    return %arg0, %c0_i32 : i32, i32
  }
  func.func @transform_1(%arg0: i32) -> (i32, i32) {
    %c0_i32 = arith.constant 0 : i32
    %c0_i32_0 = arith.constant 0 : i32
    %c0_i32_1 = arith.constant 0 : i32
    return %c0_i32, %c0_i32_0 : i32, i32
  }
  func.func @transform_2(%arg0: i32) -> (i32, i32) {
    %c0_i32 = arith.constant 0 : i32
    %c0_i32_0 = arith.constant 0 : i32
    %c0_i32_1 = arith.constant 0 : i32
    return %c0_i32, %c0_i32_0 : i32, i32
  }
  func.func @transform_3(%arg0: i32) -> (i32, i32) {
    %c0_i32 = arith.constant 0 : i32
    %c0_i32_0 = arith.constant 0 : i32
    %c0_i32_1 = arith.constant 0 : i32
    return %c0_i32, %c0_i32_0 : i32, i32
  }
  func.func @transform_4(%arg0: i32) -> (i32, i32) {
    %c0_i32 = arith.constant 0 : i32
    %c0_i32_0 = arith.constant 0 : i32
    %c0_i32_1 = arith.constant 0 : i32
    return %c0_i32, %c0_i32_0 : i32, i32
  }
  func.func @transform_5(%arg0: i32) -> (i32, i32) {
    %c0_i32 = arith.constant 0 : i32
    %c0_i32_0 = arith.constant 0 : i32
    %c0_i32_1 = arith.constant 0 : i32
    return %c0_i32, %c0_i32_0 : i32, i32
  }
  func.func @transform_6(%arg0: i32) -> (i32, i32) {
    %c0_i32 = arith.constant 0 : i32
    %c0_i32_0 = arith.constant 0 : i32
    %c0_i32_1 = arith.constant 0 : i32
    return %c0_i32, %c0_i32_0 : i32, i32
  }
  func.func @transform_7(%arg0: i32) -> (i32, i32) {
    %c0_i32 = arith.constant 0 : i32
    %c0_i32_0 = arith.constant 0 : i32
    %c0_i32_1 = arith.constant 0 : i32
    return %c0_i32, %c0_i32_0 : i32, i32
  }
  func.func @transform_8(%arg0: i32) -> (i32, i32) {
    %c0_i32 = arith.constant 0 : i32
    %c0_i32_0 = arith.constant 0 : i32
    %c0_i32_1 = arith.constant 0 : i32
    return %c0_i32, %c0_i32_0 : i32, i32
  }
  func.func @transform_9(%arg0: i32) -> (i32, i32) {
    %c0_i32 = arith.constant 0 : i32
    %c0_i32_0 = arith.constant 0 : i32
    %c0_i32_1 = arith.constant 0 : i32
    return %c0_i32, %c0_i32_0 : i32, i32
  }
  func.func @transform_10(%arg0: i32) -> (i32, i32) {
    %c0_i32 = arith.constant 0 : i32
    %c0_i32_0 = arith.constant 0 : i32
    %c0_i32_1 = arith.constant 0 : i32
    return %c0_i32, %c0_i32_0 : i32, i32
  }
  func.func @transform_11(%arg0: i32) -> (i32, i32) {
    %c0_i32 = arith.constant 0 : i32
    %c0_i32_0 = arith.constant 0 : i32
    return %arg0, %c0_i32 : i32, i32
  }
}

</mosaic_0001>

<llo_original>
// kernel: tpu_custom_call.1
$region0: #{tpu_custom_call.1}
  #allocation0 [shape = 'u32[]', space=smem, size = 0x4, offset = 0x4, fixed_abs, tag = 'smem constant byte address 0x4 - core index']
  #allocation1 [shape = 'u32[144,128]{1,0:T(1,128)}', space=vmem, size = 0x12000, scoped, tag = 'internal scratch']
  #allocation2 [shape = 'f32[8,256]{1,0:T(8,128)}', space=vmem, size = 0x2000, scoped, tag = 'scratch operand']
  %s0 = inlined_call_operand.vmem [shape: f32[16,16], index: 0, kind: input, shape index: {}]
  %s1 = inlined_call_operand.vmem [shape: f32[8,16], index: 1, kind: input, shape index: {}]
  %s2 = inlined_call_operand.vmem [shape: bf16[16,32], index: 2, kind: input, shape index: {}]
  %s3 = inlined_call_operand.vmem [shape: f32[8,32], index: 3, kind: input, shape index: {}]
  %s4 = inlined_call_operand.vmem [shape: f32[8,32], index: 4, kind: input, shape index: {}]
  %s5 = inlined_call_operand.vmem [shape: f32[8,32], index: 5, kind: input, shape index: {}]
  %s6 = inlined_call_operand.vmem [shape: bf16[32,32], index: 6, kind: input, shape index: {}]
  %s7 = inlined_call_operand.vmem [shape: f32[8,32], index: 7, kind: input, shape index: {}]
  %s8 = inlined_call_operand.vmem [shape: f32[8,32], index: 8, kind: input, shape index: {}]
  %s9 = inlined_call_operand.vmem [shape: bf16[256,8], index: 9, kind: input, shape index: {}]
  %s10 = inlined_call_operand.vmem [shape: f32[1,8], index: 10, kind: input, shape index: {}]
  %s11 = inlined_call_operand.vmem [shape: f32[16,8], index: 11, kind: output, shape index: {}]
  %s12 = sld [smem:[#allocation0]]
  $region77: #{tpu_custom_call.1} parent=0
    _
  %s14 = ssub.s32 1, %s12
  %s15 = scalar_select 0, %s14, %s12
  loop: start=0, step=1, limit=4
  $region2: #{tpu_custom_call.1} parent=0 // loop_pre_header
    _
  $region3: #{tpu_custom_call.1} parent=0 // loop_header
    %s17 = sphi 0, %s21
    %p18 = scmp.ge.s32.totalorder %s17, 4
    %s27 = sphi 0, %s29
    %s30 = sphi 0, %s27
    %s31 = sphi 0, %s30
    %s47 = sphi 0, %s31
    %s51 = sphi 0, %s51
    %s53 = sphi 0, %s51
    %s54 = sphi 0, %s53
    %s68 = sphi 0, %s54
    %s72 = sphi 0, %s72
    %s74 = sphi 0, %s72
    %s75 = sphi 0, %s74
    %s89 = sphi 0, %s75
    %s93 = sphi 0, %s93
    %s95 = sphi 0, %s93
    %s96 = sphi 0, %s95
    %s110 = sphi 0, %s96
    %s114 = sphi 0, %s114
    %s116 = sphi 0, %s114
    %s117 = sphi 0, %s116
    %s131 = sphi 0, %s117
    %s135 = sphi 0, %s135
    %s137 = sphi 0, %s135
    %s138 = sphi 0, %s137
    %s152 = sphi 0, %s138
    %s156 = sphi 0, %s156
    %s158 = sphi 0, %s156
    %s159 = sphi 0, %s158
    %s173 = sphi 0, %s159
    %s177 = sphi 0, %s177
    %s179 = sphi 0, %s177
    %s180 = sphi 0, %s179
    %s194 = sphi 0, %s180
    %s198 = sphi 0, %s198
    %s200 = sphi 0, %s198
    %s201 = sphi 0, %s200
    %s215 = sphi 0, %s201
    %s219 = sphi 0, %s219
    %s221 = sphi 0, %s219
    %s222 = sphi 0, %s221
    %s236 = sphi 0, %s222
    %s240 = sphi 0, %s240
    %s242 = sphi 0, %s240
    %s243 = sphi 0, %s242
    %s257 = sphi 0, %s243
    %s263 = sphi 0, %s265
    %s266 = sphi 0, %s263
    %s267 = sphi 0, %s266
    %s283 = sphi 0, %s267
  $region4: #{tpu_custom_call.1} parent=0 // loop_header_branch
    %20 = sbr.rel (%p18) target = $region8
  $region5: #{tpu_custom_call.1} parent=0 // loop_body
    %s22 = ssub.s32 %s17, 1
    %s23 = ssub.s32 %s17, 2
    %s24 = sadd.s32 %s17, 1
    %s25 = ssub.s32 %s17, %s24
    %p26 = scmp.eq.s32.totalorder %s25, 0
    %s28 = sadd.s32 %s27, 1
    %s29 = scalar_select %p26, %s27, %s28
    %p32 = pneg %p26
    %p33 = scmp.eq.s32.totalorder %s17, 1
    %p34 = por %p32, %p33
    %p35 = scmp.ne.s32.totalorder %s27, %s30
    %p36 = scmp.eq.s32.totalorder %s17, 0
    %p37 = por %p35, %p36
    %p38 = scmp.ne.s32.totalorder %s27, %s30
    %p39 = scmp.eq.s32.totalorder %s22, 1
    %p40 = por %p38, %p39
    %p41 = scmp.ne.s32.totalorder %s30, %s31
    %p42 = scmp.eq.s32.totalorder %s22, 0
    %p43 = por %p41, %p42
    %p44 = scmp.ne.s32.totalorder %s30, %s31
    %p45 = scmp.eq.s32.totalorder %s23, 1
    %p46 = por %p44, %p45
    %p48 = scmp.ne.s32.totalorder %s31, %s47
    %p49 = scmp.eq.s32.totalorder %s23, 0
    %p50 = por %p48, %p49
    %s52 = sadd.s32 %s51, 1
    %p55 = scmp.eq.s32.totalorder %s17, 1
    %p56 = scmp.ne.s32.totalorder %s51, %s53
    %p57 = scmp.eq.s32.totalorder %s17, 0
    %p58 = por %p56, %p57
    %p59 = scmp.ne.s32.totalorder %s51, %s53
    %p60 = scmp.eq.s32.totalorder %s22, 1
    %p61 = por %p59, %p60
    %p62 = scmp.ne.s32.totalorder %s53, %s54
    %p63 = scmp.eq.s32.totalorder %s22, 0
    %p64 = por %p62, %p63
    %p65 = scmp.ne.s32.totalorder %s53, %s54
    %p66 = scmp.eq.s32.totalorder %s23, 1
    %p67 = por %p65, %p66
    %p69 = scmp.ne.s32.totalorder %s54, %s68
    %p70 = scmp.eq.s32.totalorder %s23, 0
    %p71 = por %p69, %p70
    %s73 = sadd.s32 %s72, 1
    %p76 = scmp.eq.s32.totalorder %s17, 1
    %p77 = scmp.ne.s32.totalorder %s72, %s74
    %p78 = scmp.eq.s32.totalorder %s17, 0
    %p79 = por %p77, %p78
    %p80 = scmp.ne.s32.totalorder %s72, %s74
    %p81 = scmp.eq.s32.totalorder %s22, 1
    %p82 = por %p80, %p81
    %p83 = scmp.ne.s32.totalorder %s74, %s75
    %p84 = scmp.eq.s32.totalorder %s22, 0
    %p85 = por %p83, %p84
    %p86 = scmp.ne.s32.totalorder %s74, %s75
    %p87 = scmp.eq.s32.totalorder %s23, 1
    %p88 = por %p86, %p87
    %p90 = scmp.ne.s32.totalorder %s75, %s89
    %p91 = scmp.eq.s32.totalorder %s23, 0
    %p92 = por %p90, %p91
    %s94 = sadd.s32 %s93, 1
    %p97 = scmp.eq.s32.totalorder %s17, 1
    %p98 = scmp.ne.s32.totalorder %s93, %s95
    %p99 = scmp.eq.s32.totalorder %s17, 0
    %p100 = por %p98, %p99
    %p101 = scmp.ne.s32.totalorder %s93, %s95
    %p102 = scmp.eq.s32.totalorder %s22, 1
    %p103 = por %p101, %p102
    %p104 = scmp.ne.s32.totalorder %s95, %s96
    %p105 = scmp.eq.s32.totalorder %s22, 0
    %p106 = por %p104, %p105
    %p107 = scmp.ne.s32.totalorder %s95, %s96
    %p108 = scmp.eq.s32.totalorder %s23, 1
    %p109 = por %p107, %p108
    %p111 = scmp.ne.s32.totalorder %s96, %s110
    %p112 = scmp.eq.s32.totalorder %s23, 0
    %p113 = por %p111, %p112
    %s115 = sadd.s32 %s114, 1
    %p118 = scmp.eq.s32.totalorder %s17, 1
    %p119 = scmp.ne.s32.totalorder %s114, %s116
    %p120 = scmp.eq.s32.totalorder %s17, 0
    %p121 = por %p119, %p120
    %p122 = scmp.ne.s32.totalorder %s114, %s116
    %p123 = scmp.eq.s32.totalorder %s22, 1
    %p124 = por %p122, %p123
    %p125 = scmp.ne.s32.totalorder %s116, %s117
    %p126 = scmp.eq.s32.totalorder %s22, 0
    %p127 = por %p125, %p126
    %p128 = scmp.ne.s32.totalorder %s116, %s117
    %p129 = scmp.eq.s32.totalorder %s23, 1
    %p130 = por %p128, %p129
    %p132 = scmp.ne.s32.totalorder %s117, %s131
    %p133 = scmp.eq.s32.totalorder %s23, 0
    %p134 = por %p132, %p133
    %s136 = sadd.s32 %s135, 1
    %p139 = scmp.eq.s32.totalorder %s17, 1
    %p140 = scmp.ne.s32.totalorder %s135, %s137
    %p141 = scmp.eq.s32.totalorder %s17, 0
    %p142 = por %p140, %p141
    %p143 = scmp.ne.s32.totalorder %s135, %s137
    %p144 = scmp.eq.s32.totalorder %s22, 1
    %p145 = por %p143, %p144
    %p146 = scmp.ne.s32.totalorder %s137, %s138
    %p147 = scmp.eq.s32.totalorder %s22, 0
    %p148 = por %p146, %p147
    %p149 = scmp.ne.s32.totalorder %s137, %s138
    %p150 = scmp.eq.s32.totalorder %s23, 1
    %p151 = por %p149, %p150
    %p153 = scmp.ne.s32.totalorder %s138, %s152
    %p154 = scmp.eq.s32.totalorder %s23, 0
    %p155 = por %p153, %p154
    %s157 = sadd.s32 %s156, 1
    %p160 = scmp.eq.s32.totalorder %s17, 1
    %p161 = scmp.ne.s32.totalorder %s156, %s158
    %p162 = scmp.eq.s32.totalorder %s17, 0
    %p163 = por %p161, %p162
    %p164 = scmp.ne.s32.totalorder %s156, %s158
    %p165 = scmp.eq.s32.totalorder %s22, 1
    %p166 = por %p164, %p165
    %p167 = scmp.ne.s32.totalorder %s158, %s159
    %p168 = scmp.eq.s32.totalorder %s22, 0
    %p169 = por %p167, %p168
    %p170 = scmp.ne.s32.totalorder %s158, %s159
    %p171 = scmp.eq.s32.totalorder %s23, 1
    %p172 = por %p170, %p171
    %p174 = scmp.ne.s32.totalorder %s159, %s173
    %p175 = scmp.eq.s32.totalorder %s23, 0
    %p176 = por %p174, %p175
    %s178 = sadd.s32 %s177, 1
    %p181 = scmp.eq.s32.totalorder %s17, 1
    %p182 = scmp.ne.s32.totalorder %s177, %s179
    %p183 = scmp.eq.s32.totalorder %s17, 0
    %p184 = por %p182, %p183
    %p185 = scmp.ne.s32.totalorder %s177, %s179
    %p186 = scmp.eq.s32.totalorder %s22, 1
    %p187 = por %p185, %p186
    %p188 = scmp.ne.s32.totalorder %s179, %s180
    %p189 = scmp.eq.s32.totalorder %s22, 0
    %p190 = por %p188, %p189
    %p191 = scmp.ne.s32.totalorder %s179, %s180
    %p192 = scmp.eq.s32.totalorder %s23, 1
    %p193 = por %p191, %p192
    %p195 = scmp.ne.s32.totalorder %s180, %s194
    %p196 = scmp.eq.s32.totalorder %s23, 0
    %p197 = por %p195, %p196
    %s199 = sadd.s32 %s198, 1
    %p202 = scmp.eq.s32.totalorder %s17, 1
    %p203 = scmp.ne.s32.totalorder %s198, %s200
    %p204 = scmp.eq.s32.totalorder %s17, 0
    %p205 = por %p203, %p204
    %p206 = scmp.ne.s32.totalorder %s198, %s200
    %p207 = scmp.eq.s32.totalorder %s22, 1
    %p208 = por %p206, %p207
    %p209 = scmp.ne.s32.totalorder %s200, %s201
    %p210 = scmp.eq.s32.totalorder %s22, 0
    %p211 = por %p209, %p210
    %p212 = scmp.ne.s32.totalorder %s200, %s201
    %p213 = scmp.eq.s32.totalorder %s23, 1
    %p214 = por %p212, %p213
    %p216 = scmp.ne.s32.totalorder %s201, %s215
    %p217 = scmp.eq.s32.totalorder %s23, 0
    %p218 = por %p216, %p217
    %s220 = sadd.s32 %s219, 1
    %p223 = scmp.eq.s32.totalorder %s17, 1
    %p224 = scmp.ne.s32.totalorder %s219, %s221
    %p225 = scmp.eq.s32.totalorder %s17, 0
    %p226 = por %p224, %p225
    %p227 = scmp.ne.s32.totalorder %s219, %s221
    %p228 = scmp.eq.s32.totalorder %s22, 1
    %p229 = por %p227, %p228
    %p230 = scmp.ne.s32.totalorder %s221, %s222
    %p231 = scmp.eq.s32.totalorder %s22, 0
    %p232 = por %p230, %p231
    %p233 = scmp.ne.s32.totalorder %s221, %s222
    %p234 = scmp.eq.s32.totalorder %s23, 1
    %p235 = por %p233, %p234
    %p237 = scmp.ne.s32.totalorder %s222, %s236
    %p238 = scmp.eq.s32.totalorder %s23, 0
    %p239 = por %p237, %p238
    %s241 = sadd.s32 %s240, 1
    %p244 = scmp.eq.s32.totalorder %s17, 1
    %p245 = scmp.ne.s32.totalorder %s240, %s242
    %p246 = scmp.eq.s32.totalorder %s17, 0
    %p247 = por %p245, %p246
    %p248 = scmp.ne.s32.totalorder %s240, %s242
    %p249 = scmp.eq.s32.totalorder %s22, 1
    %p250 = por %p248, %p249
    %p251 = scmp.ne.s32.totalorder %s242, %s243
    %p252 = scmp.eq.s32.totalorder %s22, 0
    %p253 = por %p251, %p252
    %p254 = scmp.ne.s32.totalorder %s242, %s243
    %p255 = scmp.eq.s32.totalorder %s23, 1
    %p256 = por %p254, %p255
    %p258 = scmp.ne.s32.totalorder %s243, %s257
    %p259 = scmp.eq.s32.totalorder %s23, 0
    %p260 = por %p258, %p259
    %s261 = ssub.s32 %s17, %s24
    %p262 = scmp.eq.s32.totalorder %s261, 0
    %s264 = sadd.s32 %s263, 1
    %s265 = scalar_select %p262, %s263, %s264
    %p268 = pneg %p262
    %p269 = scmp.eq.s32.totalorder %s17, 1
    %p270 = por %p268, %p269
    %p271 = scmp.ne.s32.totalorder %s263, %s266
    %p272 = scmp.eq.s32.totalorder %s17, 0
    %p273 = por %p271, %p272
    %p274 = scmp.ne.s32.totalorder %s263, %s266
    %p275 = scmp.eq.s32.totalorder %s22, 1
    %p276 = por %p274, %p275
    %p277 = scmp.ne.s32.totalorder %s266, %s267
    %p278 = scmp.eq.s32.totalorder %s22, 0
    %p279 = por %p277, %p278
    %p280 = scmp.ne.s32.totalorder %s266, %s267
    %p281 = scmp.eq.s32.totalorder %s23, 1
    %p282 = por %p280, %p281
    %p284 = scmp.ne.s32.totalorder %s267, %s283
    %p285 = scmp.eq.s32.totalorder %s23, 0
    %p286 = por %p284, %p285
    %p287 = scmp.le.s32.totalorder 1, %s17
    %p288 = scmp.lt.s32.totalorder %s17, 3
    %p289 = pnand %p287, %p288
    %p290 = pneg %p289
    // Predicated region
    $region9: #{tpu_custom_call.1} parent=5 // pred_check
      _
    $region10: #{tpu_custom_call.1} parent=5 // pred_check_branch
      %292 = sbr.rel (%p289) target = $region12
    $region11: #{tpu_custom_call.1} parent=5 // pred_region
      %s293 = ssub.s32 %s17, 1
      // Predicated region
      $region13: #{tpu_custom_call.1} parent=11 // pred_check
        %p294 = pneg %p64
      $region14: #{tpu_custom_call.1} parent=11 // pred_check_branch
        %296 = sbr.rel (%p294) target = $region16
      $region15: #{tpu_custom_call.1} parent=11 // pred_region
        _
      $region16: #{tpu_custom_call.1} parent=11 // pred_fallthru
        _
      // Predicated region
      $region17: #{tpu_custom_call.1} parent=11 // pred_check
        %p297 = pneg %p85
      $region18: #{tpu_custom_call.1} parent=11 // pred_check_branch
        %299 = sbr.rel (%p297) target = $region20
      $region19: #{tpu_custom_call.1} parent=11 // pred_region
        _
      $region20: #{tpu_custom_call.1} parent=11 // pred_fallthru
        _
      // Predicated region
      $region21: #{tpu_custom_call.1} parent=11 // pred_check
        %p300 = pneg %p106
      $region22: #{tpu_custom_call.1} parent=11 // pred_check_branch
        %302 = sbr.rel (%p300) target = $region24
      $region23: #{tpu_custom_call.1} parent=11 // pred_region
        _
      $region24: #{tpu_custom_call.1} parent=11 // pred_fallthru
        _
      // Predicated region
      $region25: #{tpu_custom_call.1} parent=11 // pred_check
        %p303 = pneg %p127
      $region26: #{tpu_custom_call.1} parent=11 // pred_check_branch
        %305 = sbr.rel (%p303) target = $region28
      $region27: #{tpu_custom_call.1} parent=11 // pred_region
        _
      $region28: #{tpu_custom_call.1} parent=11 // pred_fallthru
        _
      // Predicated region
      $region29: #{tpu_custom_call.1} parent=11 // pred_check
        %p306 = pneg %p148
      $region30: #{tpu_custom_call.1} parent=11 // pred_check_branch
        %308 = sbr.rel (%p306) target = $region32
      $region31: #{tpu_custom_call.1} parent=11 // pred_region
        _
      $region32: #{tpu_custom_call.1} parent=11 // pred_fallthru
        _
      // Predicated region
      $region33: #{tpu_custom_call.1} parent=11 // pred_check
        %p309 = pneg %p169
      $region34: #{tpu_custom_call.1} parent=11 // pred_check_branch
        %311 = sbr.rel (%p309) target = $region36
      $region35: #{tpu_custom_call.1} parent=11 // pred_region
        _
      $region36: #{tpu_custom_call.1} parent=11 // pred_fallthru
        _
      // Predicated region
      $region37: #{tpu_custom_call.1} parent=11 // pred_check
        %p312 = pneg %p190
      $region38: #{tpu_custom_call.1} parent=11 // pred_check_branch
        %314 = sbr.rel (%p312) target = $region40
      $region39: #{tpu_custom_call.1} parent=11 // pred_region
        _
      $region40: #{tpu_custom_call.1} parent=11 // pred_fallthru
        _
      // Predicated region
      $region41: #{tpu_custom_call.1} parent=11 // pred_check
        %p315 = pneg %p211
      $region42: #{tpu_custom_call.1} parent=11 // pred_check_branch
        %317 = sbr.rel (%p315) target = $region44
      $region43: #{tpu_custom_call.1} parent=11 // pred_region
        _
      $region44: #{tpu_custom_call.1} parent=11 // pred_fallthru
        _
      // Predicated region
      $region45: #{tpu_custom_call.1} parent=11 // pred_check
        %p318 = pneg %p232
      $region46: #{tpu_custom_call.1} parent=11 // pred_check_branch
        %320 = sbr.rel (%p318) target = $region48
      $region47: #{tpu_custom_call.1} parent=11 // pred_region
        _
      $region48: #{tpu_custom_call.1} parent=11 // pred_fallthru
        _
      // Predicated region
      $region49: #{tpu_custom_call.1} parent=11 // pred_check
        %p321 = pneg %p253
      $region50: #{tpu_custom_call.1} parent=11 // pred_check_branch
        %323 = sbr.rel (%p321) target = $region52
      $region51: #{tpu_custom_call.1} parent=11 // pred_region
        _
      $region52: #{tpu_custom_call.1} parent=11 // pred_fallthru
        _
    $region12: #{tpu_custom_call.1} parent=5 // pred_fallthru
      _
    %p324 = scmp.lt.s32.totalorder %s17, 2
    // Predicated region
    $region53: #{tpu_custom_call.1} parent=5 // pred_check
      %p325 = pneg %p324
    $region54: #{tpu_custom_call.1} parent=5 // pred_check_branch
      %327 = sbr.rel (%p325) target = $region56
    $region55: #{tpu_custom_call.1} parent=5 // pred_region
      // Predicated region
      $region57: #{tpu_custom_call.1} parent=55 // pred_check
        %p328 = pneg %p37
      $region58: #{tpu_custom_call.1} parent=55 // pred_check_branch
        %330 = sbr.rel (%p328) target = $region60
      $region59: #{tpu_custom_call.1} parent=55 // pred_region
        %p331 = scmp.lt.s32.totalorder %s17, 1
        %s332 = scalar_select %p331, %s17, 1
        %s333 = smul.addr %s332, 8
        %s334 = scalar_lea.vmem %s0, %s333
      $region60: #{tpu_custom_call.1} parent=55 // pred_fallthru
        _
    $region56: #{tpu_custom_call.1} parent=5 // pred_fallthru
      _
    %p335 = scmp.le.s32.totalorder 1, %s17
    %p336 = scmp.lt.s32.totalorder %s17, 3
    %p337 = pnand %p335, %p336
    %p338 = pneg %p337
    // Predicated region
    $region61: #{tpu_custom_call.1} parent=5 // pred_check
      _
    $region62: #{tpu_custom_call.1} parent=5 // pred_check_branch
      %340 = sbr.rel (%p337) target = $region64
    $region63: #{tpu_custom_call.1} parent=5 // pred_region
      %s341 = ssub.s32 %s17, 1
      %p342 = scmp.lt.s32.totalorder %s22, 1
      %s343 = scalar_select %p342, %s22, 1
      %s344 = smul.addr %s343, 8
      %s345 = scalar_lea.vmem %s0, %s344
      %p346 = pneg %p43
      %p347 = pneg %p40
      %p348 = pneg %p64
      %p349 = pneg %p61
      %p350 = pneg %p85
      %p351 = pneg %p82
      %p352 = pneg %p106
      %p353 = pneg %p103
      %p354 = pneg %p127
      %p355 = pneg %p124
      %p356 = pneg %p148
      %p357 = pneg %p145
      %p358 = pneg %p169
      %p359 = pneg %p166
      %p360 = pneg %p190
      %p361 = pneg %p187
      %p362 = pneg %p211
      %p363 = pneg %p208
      %p364 = pneg %p232
      %p365 = pneg %p229
      %p366 = pneg %p253
      %p367 = pneg %p250
      %p368 = pneg %p279
      %p369 = pneg %p276
      %p370 = scmp.lt.s32.totalorder %s22, 1
      %s371 = scalar_select %p370, %s22, 1
      %s372 = smul.addr %s371, 8
      %s373 = scalar_lea.vmem %s11, %s372
      %p374 = scmp.lt.s32.totalorder %s22, 1
      %s375 = scalar_select %p374, %s22, 1
      %s376 = smul.addr %s375, 8
      %s377 = scalar_lea.vmem %s0, %s376
      %p378 = scmp.lt.s32.totalorder %s22, 1
      %s379 = scalar_select %p378, %s22, 1
      %s380 = smul.addr %s379, 8
      %s381 = scalar_lea.vmem %s11, %s380
      %v383 = vld [vmem:[%s377] sm:$0xff]
      %v384 = vld [vmem:[%s1] sm:$0xff]
      %v386 = vcombine.high %v384, %v384
      %v388 = vunpack.c.l.s4 1966171168
      %v389 = vunpack.c.0.s8 %v388
      %v390 = vlaneseq
      %v391 = vshrl.u32 %v390, 7
      %v392 = vsub.s32 %v389, %v391
      %v393 = vrot.slane %v384, %v392
      %v395 = vunpack.c.l.s4 1966171168
      %v396 = vunpack.c.0.s8 %v395
      %v397 = vlaneseq
      %v398 = vshrl.u32 %v397, 7
      %v399 = vsub.s32 %v396, %v398
      %v400 = vrot.slane %v386, %v399
      %v401 = vcombine.high %v393, %v393
      %v402 = vcombine.high %v400, %v400
      %v404 = vunpack.c.l.s4 1966171168
      %v405 = vunpack.c.0.s8 %v404
      %v406 = vlaneseq
      %v407 = vshrl.u32 %v406, 7
      %v408 = vsub.s32 %v405, %v407
      %v409 = vrot.slane %v393, %v408
      %v411 = vunpack.c.l.s4 1966171168
      %v412 = vunpack.c.0.s8 %v411
      %v413 = vlaneseq
      %v414 = vshrl.u32 %v413, 7
      %v415 = vsub.s32 %v412, %v414
      %v416 = vrot.slane %v400, %v415
      %v418 = vunpack.c.l.s4 1966171168
      %v419 = vunpack.c.0.s8 %v418
      %v420 = vlaneseq
      %v421 = vshrl.u32 %v420, 7
      %v422 = vsub.s32 %v419, %v421
      %v423 = vrot.slane %v401, %v422
      %v425 = vunpack.c.l.s4 1966171168
      %v426 = vunpack.c.0.s8 %v425
      %v427 = vlaneseq
      %v428 = vshrl.u32 %v427, 7
      %v429 = vsub.s32 %v426, %v428
      %v430 = vrot.slane %v402, %v429
      %v431 = vcombine.high %v409, %v409
      %v432 = vcombine.high %v416, %v416
      %v433 = vcombine.high %v423, %v423
      %v434 = vcombine.high %v430, %v430
      %v435 = vlaneseq
      %v436 = vshrl.u32 %v435, 7
      %v437 = vsub.s32 0, %v436
      %v438 = vrot.slane %v409, %v437
      %v439 = vlaneseq
      %v440 = vshrl.u32 %v439, 7
      %v441 = vsub.s32 0, %v440
      %v442 = vrot.slane %v423, %v441
      %v443 = vlaneseq
      %v444 = vshrl.u32 %v443, 7
      %v445 = vsub.s32 0, %v444
      %v446 = vrot.slane %v431, %v445
      %v447 = vlaneseq
      %v448 = vshrl.u32 %v447, 7
      %v449 = vsub.s32 0, %v448
      %v450 = vrot.slane %v433, %v449
      %v451 = vlaneseq
      %v452 = vshrl.u32 %v451, 7
      %v453 = vsub.s32 0, %v452
      %v454 = vrot.slane %v416, %v453
      %v455 = vlaneseq
      %v456 = vshrl.u32 %v455, 7
      %v457 = vsub.s32 0, %v456
      %v458 = vrot.slane %v430, %v457
      %v459 = vlaneseq
      %v460 = vshrl.u32 %v459, 7
      %v461 = vsub.s32 0, %v460
      %v462 = vrot.slane %v432, %v461
      %v463 = vlaneseq
      %v464 = vshrl.u32 %v463, 7
      %v465 = vsub.s32 0, %v464
      %v466 = vrot.slane %v434, %v465
      %v475 = vmul.f32 %v383, %v438
      %v476 = vmul.f32 %v383, %v442
      %v477 = vmul.f32 %v383, %v446
      %v478 = vmul.f32 %v383, %v450
      %v479 = vmul.f32 %v383, %v454
      %v480 = vmul.f32 %v383, %v458
      %v481 = vmul.f32 %v383, %v462
      %v482 = vmul.f32 %v383, %v466
      %v483 = vpack.c.bf16 %v476, %v475
      %v484 = vpack.c.bf16 %v478, %v477
      %v485 = vpack.c.bf16 %v480, %v479
      %v486 = vpack.c.bf16 %v482, %v481
      %v487 = vld [vmem:[%s2] sm:$0xf]
      %v488 = vld [vmem:[%s2 + $0x4] sm:$0xf]
      %v491 = vunpack.c.l.b16 %v487
      %v492 = vunpack.c.l.b16 %v488
      %v493 = vpack.c.b16 %v492, %v491
      %vm495 = vcmask 130048
      %v497 = vsel %vm495, %v483, 0
      %v500 = vsel %vm495, %v484, 0
      %v503 = vsel %vm495, %v485, 0
      %v506 = vsel %vm495, %v486, 0
      %508 = vmatprep.subr.bf16.mxu0 0
      %509 = vmatpush1.bf16.msra.mxu0 %v493
      %510 = vmatprep.subr.bf16.mxu0 0
      %511 = vmatpush1.bf16.msra.mxu0 0
      %512 = vmatprep.subr.bf16.mxu0 0
      %513 = vmatpush1.bf16.msra.mxu0 0
      %514 = vmatprep.subr.bf16.mxu0 0
      %515 = vmatpush1.bf16.msra.mxu0 0
      %516 = vmatprep.subr.bf16.mxu0 0
      %517 = vmatpush1.bf16.msra.mxu0 0
      %518 = vmatprep.subr.bf16.mxu0 0
      %519 = vmatpush1.bf16.msra.mxu0 0
      %520 = vmatprep.subr.bf16.mxu0 0
      %521 = vmatpush1.bf16.msra.mxu0 0
      %522 = vmatprep.subr.bf16.mxu0 0
      %523 = vmatpush1.bf16.msra.mxu0 0
      %524 = vmatprep.subr.bf16.mxu0 0
      %525 = vmatpush1.bf16.msra.mxu0 0
      %526 = vmatprep.subr.bf16.mxu0 0
      %527 = vmatpush1.bf16.msra.mxu0 0
      %528 = vmatprep.subr.bf16.mxu0 0
      %529 = vmatpush1.bf16.msra.mxu0 0
      %530 = vmatprep.subr.bf16.mxu0 0
      %531 = vmatpush1.bf16.msra.mxu0 0
      %532 = vmatprep.subr.bf16.mxu0 0
      %533 = vmatpush1.bf16.msra.mxu0 0
      %534 = vmatprep.subr.bf16.mxu0 0
      %535 = vmatpush1.bf16.msra.mxu0 0
      %536 = vmatprep.subr.bf16.mxu0 0
      %537 = vmatpush1.bf16.msra.mxu0 0
      %538 = vmatprep.subr.bf16.mxu0 0
      %539 = vmatpush1.bf16.msra.mxu0 0
      %540 = vmatprep.mubr.bf16.mxu0 0
      %541 = vmatmul.mubr.bf16.gmra.mrb[0].mxu0 %v497
      %v542 = vpop.f32.mrb[0].mxu0
      %v543 = vadd.f32 0.0, %v542
      %v544 = vpop.f32.mrb[0].mxu0
      %v545 = vpop.f32.mrb[0].mxu0
      %v546 = vadd.f32 0.0, %v545
      %v547 = vpop.f32.mrb[0].mxu0
      %548 = vmatprep.mubr.bf16.mxu0 0
      %549 = vmatmul.mubr.bf16.gmra.mrb[0].mxu0 %v500
      %v550 = vpop.f32.mrb[0].mxu0
      %v551 = vadd.f32 0.0, %v550
      %v552 = vpop.f32.mrb[0].mxu0
      %v553 = vpop.f32.mrb[0].mxu0
      %v554 = vadd.f32 0.0, %v553
      %v555 = vpop.f32.mrb[0].mxu0
      %556 = vmatprep.mubr.bf16.mxu0 0
      %557 = vmatmul.mubr.bf16.gmra.mrb[0].mxu0 %v503
      %v558 = vpop.f32.mrb[0].mxu0
      %v559 = vadd.f32 0.0, %v558
      %v560 = vpop.f32.mrb[0].mxu0
      %v561 = vpop.f32.mrb[0].mxu0
      %v562 = vadd.f32 0.0, %v561
      %v563 = vpop.f32.mrb[0].mxu0
      %564 = vmatprep.mubr.bf16.mxu0 0
      %565 = vmatmul.mubr.bf16.gmra.mrb[0].mxu0 %v506
      %v566 = vpop.f32.mrb[0].mxu0
      %v567 = vadd.f32 0.0, %v566
      %v568 = vpop.f32.mrb[0].mxu0
      %v569 = vpop.f32.mrb[0].mxu0
      %v570 = vadd.f32 0.0, %v569
      %v571 = vpop.f32.mrb[0].mxu0
      %572 = vdwg.mxu0
      %v573 = vld [vmem:[%s3] sm:$0xff]
      %v575 = vcombine.high %v573, %v573
      %v577 = vunpack.c.l.s4 1966171168
      %v578 = vunpack.c.0.s8 %v577
      %v579 = vlaneseq
      %v580 = vshrl.u32 %v579, 7
      %v581 = vsub.s32 %v578, %v580
      %v582 = vrot.slane %v573, %v581
      %v584 = vunpack.c.l.s4 1966171168
      %v585 = vunpack.c.0.s8 %v584
      %v586 = vlaneseq
      %v587 = vshrl.u32 %v586, 7
      %v588 = vsub.s32 %v585, %v587
      %v589 = vrot.slane %v575, %v588
      %v590 = vcombine.high %v582, %v582
      %v591 = vcombine.high %v589, %v589
      %v593 = vunpack.c.l.s4 1966171168
      %v594 = vunpack.c.0.s8 %v593
      %v595 = vlaneseq
      %v596 = vshrl.u32 %v595, 7
      %v597 = vsub.s32 %v594, %v596
      %v598 = vrot.slane %v582, %v597
      %v600 = vunpack.c.l.s4 1966171168
      %v601 = vunpack.c.0.s8 %v600
      %v602 = vlaneseq
      %v603 = vshrl.u32 %v602, 7
      %v604 = vsub.s32 %v601, %v603
      %v605 = vrot.slane %v589, %v604
      %v607 = vunpack.c.l.s4 1966171168
      %v608 = vunpack.c.0.s8 %v607
      %v609 = vlaneseq
      %v610 = vshrl.u32 %v609, 7
      %v611 = vsub.s32 %v608, %v610
      %v612 = vrot.slane %v590, %v611
      %v614 = vunpack.c.l.s4 1966171168
      %v615 = vunpack.c.0.s8 %v614
      %v616 = vlaneseq
      %v617 = vshrl.u32 %v616, 7
      %v618 = vsub.s32 %v615, %v617
      %v619 = vrot.slane %v591, %v618
      %v620 = vcombine.high %v598, %v598
      %v621 = vcombine.high %v605, %v605
      %v622 = vcombine.high %v612, %v612
      %v623 = vcombine.high %v619, %v619
      %v624 = vlaneseq
      %v625 = vshrl.u32 %v624, 7
      %v626 = vsub.s32 0, %v625
      %v627 = vrot.slane %v598, %v626
      %v628 = vlaneseq
      %v629 = vshrl.u32 %v628, 7
      %v630 = vsub.s32 0, %v629
      %v631 = vrot.slane %v612, %v630
      %v632 = vlaneseq
      %v633 = vshrl.u32 %v632, 7
      %v634 = vsub.s32 0, %v633
      %v635 = vrot.slane %v620, %v634
      %v636 = vlaneseq
      %v637 = vshrl.u32 %v636, 7
      %v638 = vsub.s32 0, %v637
      %v639 = vrot.slane %v622, %v638
      %v640 = vlaneseq
      %v641 = vshrl.u32 %v640, 7
      %v642 = vsub.s32 0, %v641
      %v643 = vrot.slane %v605, %v642
      %v644 = vlaneseq
      %v645 = vshrl.u32 %v644, 7
      %v646 = vsub.s32 0, %v645
      %v647 = vrot.slane %v619, %v646
      %v648 = vlaneseq
      %v649 = vshrl.u32 %v648, 7
      %v650 = vsub.s32 0, %v649
      %v651 = vrot.slane %v621, %v650
      %v652 = vlaneseq
      %v653 = vshrl.u32 %v652, 7
      %v654 = vsub.s32 0, %v653
      %v655 = vrot.slane %v623, %v654
      %v664 = vmul.f32 %v543, %v627
      %v665 = vmul.f32 %v546, %v631
      %v666 = vmul.f32 %v551, %v635
      %v667 = vmul.f32 %v554, %v639
      %v668 = vmul.f32 %v559, %v643
      %v669 = vmul.f32 %v562, %v647
      %v670 = vmul.f32 %v567, %v651
      %v671 = vmul.f32 %v570, %v655
      %v672 = vld [vmem:[%s4] sm:$0xff]
      %v674 = vcombine.high %v672, %v672
      %v676 = vunpack.c.l.s4 1966171168
      %v677 = vunpack.c.0.s8 %v676
      %v678 = vlaneseq
      %v679 = vshrl.u32 %v678, 7
      %v680 = vsub.s32 %v677, %v679
      %v681 = vrot.slane %v672, %v680
      %v683 = vunpack.c.l.s4 1966171168
      %v684 = vunpack.c.0.s8 %v683
      %v685 = vlaneseq
      %v686 = vshrl.u32 %v685, 7
      %v687 = vsub.s32 %v684, %v686
      %v688 = vrot.slane %v674, %v687
      %v689 = vcombine.high %v681, %v681
      %v690 = vcombine.high %v688, %v688
      %v692 = vunpack.c.l.s4 1966171168
      %v693 = vunpack.c.0.s8 %v692
      %v694 = vlaneseq
      %v695 = vshrl.u32 %v694, 7
      %v696 = vsub.s32 %v693, %v695
      %v697 = vrot.slane %v681, %v696
      %v699 = vunpack.c.l.s4 1966171168
      %v700 = vunpack.c.0.s8 %v699
      %v701 = vlaneseq
      %v702 = vshrl.u32 %v701, 7
      %v703 = vsub.s32 %v700, %v702
      %v704 = vrot.slane %v688, %v703
      %v706 = vunpack.c.l.s4 1966171168
      %v707 = vunpack.c.0.s8 %v706
      %v708 = vlaneseq
      %v709 = vshrl.u32 %v708, 7
      %v710 = vsub.s32 %v707, %v709
      %v711 = vrot.slane %v689, %v710
      %v713 = vunpack.c.l.s4 1966171168
      %v714 = vunpack.c.0.s8 %v713
      %v715 = vlaneseq
      %v716 = vshrl.u32 %v715, 7
      %v717 = vsub.s32 %v714, %v716
      %v718 = vrot.slane %v690, %v717
      %v719 = vcombine.high %v697, %v697
      %v720 = vcombine.high %v704, %v704
      %v721 = vcombine.high %v711, %v711
      %v722 = vcombine.high %v718, %v718
      %v723 = vlaneseq
      %v724 = vshrl.u32 %v723, 7
      %v725 = vsub.s32 0, %v724
      %v726 = vrot.slane %v697, %v725
      %v727 = vlaneseq
      %v728 = vshrl.u32 %v727, 7
      %v729 = vsub.s32 0, %v728
      %v730 = vrot.slane %v711, %v729
      %v731 = vlaneseq
      %v732 = vshrl.u32 %v731, 7
      %v733 = vsub.s32 0, %v732
      %v734 = vrot.slane %v719, %v733
      %v735 = vlaneseq
      %v736 = vshrl.u32 %v735, 7
      %v737 = vsub.s32 0, %v736
      %v738 = vrot.slane %v721, %v737
      %v739 = vlaneseq
      %v740 = vshrl.u32 %v739, 7
      %v741 = vsub.s32 0, %v740
      %v742 = vrot.slane %v704, %v741
      %v743 = vlaneseq
      %v744 = vshrl.u32 %v743, 7
      %v745 = vsub.s32 0, %v744
      %v746 = vrot.slane %v718, %v745
      %v747 = vlaneseq
      %v748 = vshrl.u32 %v747, 7
      %v749 = vsub.s32 0, %v748
      %v750 = vrot.slane %v720, %v749
      %v751 = vlaneseq
      %v752 = vshrl.u32 %v751, 7
      %v753 = vsub.s32 0, %v752
      %v754 = vrot.slane %v722, %v753
      %v763 = vadd.f32 %v664, %v726
      %v764 = vadd.f32 %v665, %v730
      %v765 = vadd.f32 %v666, %v734
      %v766 = vadd.f32 %v667, %v738
      %v767 = vadd.f32 %v668, %v742
      %v768 = vadd.f32 %v669, %v746
      %v769 = vadd.f32 %v670, %v750
      %v770 = vadd.f32 %v671, %v754
      %v771 = vmax.f32 %v763, 0.0
      %v772 = vmax.f32 %v764, 0.0
      %v773 = vmax.f32 %v765, 0.0
      %v774 = vmax.f32 %v766, 0.0
      %v775 = vmax.f32 %v767, 0.0
      %v776 = vmax.f32 %v768, 0.0
      %v777 = vmax.f32 %v769, 0.0
      %v778 = vmax.f32 %v770, 0.0
      %v779 = vld [vmem:[%s5] sm:$0xff]
      %v781 = vcombine.high %v779, %v779
      %v783 = vunpack.c.l.s4 1966171168
      %v784 = vunpack.c.0.s8 %v783
      %v785 = vlaneseq
      %v786 = vshrl.u32 %v785, 7
      %v787 = vsub.s32 %v784, %v786
      %v788 = vrot.slane %v779, %v787
      %v790 = vunpack.c.l.s4 1966171168
      %v791 = vunpack.c.0.s8 %v790
      %v792 = vlaneseq
      %v793 = vshrl.u32 %v792, 7
      %v794 = vsub.s32 %v791, %v793
      %v795 = vrot.slane %v781, %v794
      %v796 = vcombine.high %v788, %v788
      %v797 = vcombine.high %v795, %v795
      %v799 = vunpack.c.l.s4 1966171168
      %v800 = vunpack.c.0.s8 %v799
      %v801 = vlaneseq
      %v802 = vshrl.u32 %v801, 7
      %v803 = vsub.s32 %v800, %v802
      %v804 = vrot.slane %v788, %v803
      %v806 = vunpack.c.l.s4 1966171168
      %v807 = vunpack.c.0.s8 %v806
      %v808 = vlaneseq
      %v809 = vshrl.u32 %v808, 7
      %v810 = vsub.s32 %v807, %v809
      %v811 = vrot.slane %v795, %v810
      %v813 = vunpack.c.l.s4 1966171168
      %v814 = vunpack.c.0.s8 %v813
      %v815 = vlaneseq
      %v816 = vshrl.u32 %v815, 7
      %v817 = vsub.s32 %v814, %v816
      %v818 = vrot.slane %v796, %v817
      %v820 = vunpack.c.l.s4 1966171168
      %v821 = vunpack.c.0.s8 %v820
      %v822 = vlaneseq
      %v823 = vshrl.u32 %v822, 7
      %v824 = vsub.s32 %v821, %v823
      %v825 = vrot.slane %v797, %v824
      %v826 = vcombine.high %v804, %v804
      %v827 = vcombine.high %v811, %v811
      %v828 = vcombine.high %v818, %v818
      %v829 = vcombine.high %v825, %v825
      %v830 = vlaneseq
      %v831 = vshrl.u32 %v830, 7
      %v832 = vsub.s32 0, %v831
      %v833 = vrot.slane %v804, %v832
      %v834 = vlaneseq
      %v835 = vshrl.u32 %v834, 7
      %v836 = vsub.s32 0, %v835
      %v837 = vrot.slane %v818, %v836
      %v838 = vlaneseq
      %v839 = vshrl.u32 %v838, 7
      %v840 = vsub.s32 0, %v839
      %v841 = vrot.slane %v826, %v840
      %v842 = vlaneseq
      %v843 = vshrl.u32 %v842, 7
      %v844 = vsub.s32 0, %v843
      %v845 = vrot.slane %v828, %v844
      %v846 = vlaneseq
      %v847 = vshrl.u32 %v846, 7
      %v848 = vsub.s32 0, %v847
      %v849 = vrot.slane %v811, %v848
      %v850 = vlaneseq
      %v851 = vshrl.u32 %v850, 7
      %v852 = vsub.s32 0, %v851
      %v853 = vrot.slane %v825, %v852
      %v854 = vlaneseq
      %v855 = vshrl.u32 %v854, 7
      %v856 = vsub.s32 0, %v855
      %v857 = vrot.slane %v827, %v856
      %v858 = vlaneseq
      %v859 = vshrl.u32 %v858, 7
      %v860 = vsub.s32 0, %v859
      %v861 = vrot.slane %v829, %v860
      %v870 = vmul.f32 %v771, %v833
      %v871 = vmul.f32 %v772, %v837
      %v872 = vmul.f32 %v773, %v841
      %v873 = vmul.f32 %v774, %v845
      %v874 = vmul.f32 %v775, %v849
      %v875 = vmul.f32 %v776, %v853
      %v876 = vmul.f32 %v777, %v857
      %v877 = vmul.f32 %v778, %v861
      %v878 = vpack.c.bf16 %v871, %v870
      %v879 = vpack.c.bf16 %v873, %v872
      %v880 = vpack.c.bf16 %v875, %v874
      %v881 = vpack.c.bf16 %v877, %v876
      %v882 = vld [vmem:[%s6] sm:$0xf]
      %v883 = vld [vmem:[%s6 + $0x4] sm:$0xf]
      %v884 = vld [vmem:[%s6 + $0x8] sm:$0xf]
      %v885 = vld [vmem:[%s6 + $0xc] sm:$0xf]
      %v890 = vunpack.c.l.b16 %v882
      %v891 = vunpack.c.l.b16 %v883
      %v892 = vunpack.c.l.b16 %v884
      %v893 = vunpack.c.l.b16 %v885
      %v894 = vpack.c.b16 %v891, %v890
      %v895 = vpack.c.b16 %v893, %v892
      %vm898 = vcmask 261120
      %v900 = vsel %vm898, %v878, 0
      %v903 = vsel %vm898, %v879, 0
      %v906 = vsel %vm898, %v880, 0
      %v909 = vsel %vm898, %v881, 0
      %911 = vmatprep.subr.bf16.mxu0 0
      %912 = vmatpush1.bf16.msra.mxu0 %v894
      %913 = vmatprep.subr.bf16.mxu0 0
      %914 = vmatpush1.bf16.msra.mxu0 %v895
      %915 = vmatprep.subr.bf16.mxu0 0
      %916 = vmatpush1.bf16.msra.mxu0 0
      %917 = vmatprep.subr.bf16.mxu0 0
      %918 = vmatpush1.bf16.msra.mxu0 0
      %919 = vmatprep.subr.bf16.mxu0 0
      %920 = vmatpush1.bf16.msra.mxu0 0
      %921 = vmatprep.subr.bf16.mxu0 0
      %922 = vmatpush1.bf16.msra.mxu0 0
      %923 = vmatprep.subr.bf16.mxu0 0
      %924 = vmatpush1.bf16.msra.mxu0 0
      %925 = vmatprep.subr.bf16.mxu0 0
      %926 = vmatpush1.bf16.msra.mxu0 0
      %927 = vmatprep.subr.bf16.mxu0 0
      %928 = vmatpush1.bf16.msra.mxu0 0
      %929 = vmatprep.subr.bf16.mxu0 0
      %930 = vmatpush1.bf16.msra.mxu0 0
      %931 = vmatprep.subr.bf16.mxu0 0
      %932 = vmatpush1.bf16.msra.mxu0 0
      %933 = vmatprep.subr.bf16.mxu0 0
      %934 = vmatpush1.bf16.msra.mxu0 0
      %935 = vmatprep.subr.bf16.mxu0 0
      %936 = vmatpush1.bf16.msra.mxu0 0
      %937 = vmatprep.subr.bf16.mxu0 0
      %938 = vmatpush1.bf16.msra.mxu0 0
      %939 = vmatprep.subr.bf16.mxu0 0
      %940 = vmatpush1.bf16.msra.mxu0 0
      %941 = vmatprep.subr.bf16.mxu0 0
      %942 = vmatpush1.bf16.msra.mxu0 0
      %943 = vmatprep.mubr.bf16.mxu0 0
      %944 = vmatmul.mubr.bf16.gmra.mrb[0].mxu0 %v900
      %v945 = vpop.f32.mrb[0].mxu0
      %v946 = vadd.f32 0.0, %v945
      %v947 = vpop.f32.mrb[0].mxu0
      %v948 = vpop.f32.mrb[0].mxu0
      %v949 = vadd.f32 0.0, %v948
      %v950 = vpop.f32.mrb[0].mxu0
      %951 = vmatprep.mubr.bf16.mxu0 0
      %952 = vmatmul.mubr.bf16.gmra.mrb[0].mxu0 %v903
      %v953 = vpop.f32.mrb[0].mxu0
      %v954 = vadd.f32 0.0, %v953
      %v955 = vpop.f32.mrb[0].mxu0
      %v956 = vpop.f32.mrb[0].mxu0
      %v957 = vadd.f32 0.0, %v956
      %v958 = vpop.f32.mrb[0].mxu0
      %959 = vmatprep.mubr.bf16.mxu0 0
      %960 = vmatmul.mubr.bf16.gmra.mrb[0].mxu0 %v906
      %v961 = vpop.f32.mrb[0].mxu0
      %v962 = vadd.f32 0.0, %v961
      %v963 = vpop.f32.mrb[0].mxu0
      %v964 = vpop.f32.mrb[0].mxu0
      %v965 = vadd.f32 0.0, %v964
      %v966 = vpop.f32.mrb[0].mxu0
      %967 = vmatprep.mubr.bf16.mxu0 0
      %968 = vmatmul.mubr.bf16.gmra.mrb[0].mxu0 %v909
      %v969 = vpop.f32.mrb[0].mxu0
      %v970 = vadd.f32 0.0, %v969
      %v971 = vpop.f32.mrb[0].mxu0
      %v972 = vpop.f32.mrb[0].mxu0
      %v973 = vadd.f32 0.0, %v972
      %v974 = vpop.f32.mrb[0].mxu0
      %975 = vdwg.mxu0
      %v976 = vld [vmem:[%s7] sm:$0xff]
      %v978 = vcombine.high %v976, %v976
      %v980 = vunpack.c.l.s4 1966171168
      %v981 = vunpack.c.0.s8 %v980
      %v982 = vlaneseq
      %v983 = vshrl.u32 %v982, 7
      %v984 = vsub.s32 %v981, %v983
      %v985 = vrot.slane %v976, %v984
      %v987 = vunpack.c.l.s4 1966171168
      %v988 = vunpack.c.0.s8 %v987
      %v989 = vlaneseq
      %v990 = vshrl.u32 %v989, 7
      %v991 = vsub.s32 %v988, %v990
      %v992 = vrot.slane %v978, %v991
      %v993 = vcombine.high %v985, %v985
      %v994 = vcombine.high %v992, %v992
      %v996 = vunpack.c.l.s4 1966171168
      %v997 = vunpack.c.0.s8 %v996
      %v998 = vlaneseq
      %v999 = vshrl.u32 %v998, 7
      %v1000 = vsub.s32 %v997, %v999
      %v1001 = vrot.slane %v985, %v1000
      %v1003 = vunpack.c.l.s4 1966171168
      %v1004 = vunpack.c.0.s8 %v1003
      %v1005 = vlaneseq
      %v1006 = vshrl.u32 %v1005, 7
      %v1007 = vsub.s32 %v1004, %v1006
      %v1008 = vrot.slane %v992, %v1007
      %v1010 = vunpack.c.l.s4 1966171168
      %v1011 = vunpack.c.0.s8 %v1010
      %v1012 = vlaneseq
      %v1013 = vshrl.u32 %v1012, 7
      %v1014 = vsub.s32 %v1011, %v1013
      %v1015 = vrot.slane %v993, %v1014
      %v1017 = vunpack.c.l.s4 1966171168
      %v1018 = vunpack.c.0.s8 %v1017
      %v1019 = vlaneseq
      %v1020 = vshrl.u32 %v1019, 7
      %v1021 = vsub.s32 %v1018, %v1020
      %v1022 = vrot.slane %v994, %v1021
      %v1023 = vcombine.high %v1001, %v1001
      %v1024 = vcombine.high %v1008, %v1008
      %v1025 = vcombine.high %v1015, %v1015
      %v1026 = vcombine.high %v1022, %v1022
      %v1027 = vlaneseq
      %v1028 = vshrl.u32 %v1027, 7
      %v1029 = vsub.s32 0, %v1028
      %v1030 = vrot.slane %v1001, %v1029
      %v1031 = vlaneseq
      %v1032 = vshrl.u32 %v1031, 7
      %v1033 = vsub.s32 0, %v1032
      %v1034 = vrot.slane %v1015, %v1033
      %v1035 = vlaneseq
      %v1036 = vshrl.u32 %v1035, 7
      %v1037 = vsub.s32 0, %v1036
      %v1038 = vrot.slane %v1023, %v1037
      %v1039 = vlaneseq
      %v1040 = vshrl.u32 %v1039, 7
      %v1041 = vsub.s32 0, %v1040
      %v1042 = vrot.slane %v1025, %v1041
      %v1043 = vlaneseq
      %v1044 = vshrl.u32 %v1043, 7
      %v1045 = vsub.s32 0, %v1044
      %v1046 = vrot.slane %v1008, %v1045
      %v1047 = vlaneseq
      %v1048 = vshrl.u32 %v1047, 7
      %v1049 = vsub.s32 0, %v1048
      %v1050 = vrot.slane %v1022, %v1049
      %v1051 = vlaneseq
      %v1052 = vshrl.u32 %v1051, 7
      %v1053 = vsub.s32 0, %v1052
      %v1054 = vrot.slane %v1024, %v1053
      %v1055 = vlaneseq
      %v1056 = vshrl.u32 %v1055, 7
      %v1057 = vsub.s32 0, %v1056
      %v1058 = vrot.slane %v1026, %v1057
      %v1067 = vmul.f32 %v946, %v1030
      %v1068 = vmul.f32 %v949, %v1034
      %v1069 = vmul.f32 %v954, %v1038
      %v1070 = vmul.f32 %v957, %v1042
      %v1071 = vmul.f32 %v962, %v1046
      %v1072 = vmul.f32 %v965, %v1050
      %v1073 = vmul.f32 %v970, %v1054
      %v1074 = vmul.f32 %v973, %v1058
      %v1075 = vld [vmem:[%s8] sm:$0xff]
      %v1077 = vcombine.high %v1075, %v1075
      %v1079 = vunpack.c.l.s4 1966171168
      %v1080 = vunpack.c.0.s8 %v1079
      %v1081 = vlaneseq
      %v1082 = vshrl.u32 %v1081, 7
      %v1083 = vsub.s32 %v1080, %v1082
      %v1084 = vrot.slane %v1075, %v1083
      %v1086 = vunpack.c.l.s4 1966171168
      %v1087 = vunpack.c.0.s8 %v1086
      %v1088 = vlaneseq
      %v1089 = vshrl.u32 %v1088, 7
      %v1090 = vsub.s32 %v1087, %v1089
      %v1091 = vrot.slane %v1077, %v1090
      %v1092 = vcombine.high %v1084, %v1084
      %v1093 = vcombine.high %v1091, %v1091
      %v1095 = vunpack.c.l.s4 1966171168
      %v1096 = vunpack.c.0.s8 %v1095
      %v1097 = vlaneseq
      %v1098 = vshrl.u32 %v1097, 7
      %v1099 = vsub.s32 %v1096, %v1098
      %v1100 = vrot.slane %v1084, %v1099
      %v1102 = vunpack.c.l.s4 1966171168
      %v1103 = vunpack.c.0.s8 %v1102
      %v1104 = vlaneseq
      %v1105 = vshrl.u32 %v1104, 7
      %v1106 = vsub.s32 %v1103, %v1105
      %v1107 = vrot.slane %v1091, %v1106
      %v1109 = vunpack.c.l.s4 1966171168
      %v1110 = vunpack.c.0.s8 %v1109
      %v1111 = vlaneseq
      %v1112 = vshrl.u32 %v1111, 7
      %v1113 = vsub.s32 %v1110, %v1112
      %v1114 = vrot.slane %v1092, %v1113
      %v1116 = vunpack.c.l.s4 1966171168
      %v1117 = vunpack.c.0.s8 %v1116
      %v1118 = vlaneseq
      %v1119 = vshrl.u32 %v1118, 7
      %v1120 = vsub.s32 %v1117, %v1119
      %v1121 = vrot.slane %v1093, %v1120
      %v1122 = vcombine.high %v1100, %v1100
      %v1123 = vcombine.high %v1107, %v1107
      %v1124 = vcombine.high %v1114, %v1114
      %v1125 = vcombine.high %v1121, %v1121
      %v1126 = vlaneseq
      %v1127 = vshrl.u32 %v1126, 7
      %v1128 = vsub.s32 0, %v1127
      %v1129 = vrot.slane %v1100, %v1128
      %v1130 = vlaneseq
      %v1131 = vshrl.u32 %v1130, 7
      %v1132 = vsub.s32 0, %v1131
      %v1133 = vrot.slane %v1114, %v1132
      %v1134 = vlaneseq
      %v1135 = vshrl.u32 %v1134, 7
      %v1136 = vsub.s32 0, %v1135
      %v1137 = vrot.slane %v1122, %v1136
      %v1138 = vlaneseq
      %v1139 = vshrl.u32 %v1138, 7
      %v1140 = vsub.s32 0, %v1139
      %v1141 = vrot.slane %v1124, %v1140
      %v1142 = vlaneseq
      %v1143 = vshrl.u32 %v1142, 7
      %v1144 = vsub.s32 0, %v1143
      %v1145 = vrot.slane %v1107, %v1144
      %v1146 = vlaneseq
      %v1147 = vshrl.u32 %v1146, 7
      %v1148 = vsub.s32 0, %v1147
      %v1149 = vrot.slane %v1121, %v1148
      %v1150 = vlaneseq
      %v1151 = vshrl.u32 %v1150, 7
      %v1152 = vsub.s32 0, %v1151
      %v1153 = vrot.slane %v1123, %v1152
      %v1154 = vlaneseq
      %v1155 = vshrl.u32 %v1154, 7
      %v1156 = vsub.s32 0, %v1155
      %v1157 = vrot.slane %v1125, %v1156
      %v1166 = vadd.f32 %v1067, %v1129
      %v1167 = vadd.f32 %v1068, %v1133
      %v1168 = vadd.f32 %v1069, %v1137
      %v1169 = vadd.f32 %v1070, %v1141
      %v1170 = vadd.f32 %v1071, %v1145
      %v1171 = vadd.f32 %v1072, %v1149
      %v1172 = vadd.f32 %v1073, %v1153
      %v1173 = vadd.f32 %v1074, %v1157
      %v1174 = vmax.f32 %v1166, 0.0
      %v1175 = vmax.f32 %v1167, 0.0
      %v1176 = vmax.f32 %v1168, 0.0
      %v1177 = vmax.f32 %v1169, 0.0
      %v1178 = vmax.f32 %v1170, 0.0
      %v1179 = vmax.f32 %v1171, 0.0
      %v1180 = vmax.f32 %v1172, 0.0
      %v1181 = vmax.f32 %v1173, 0.0
      %1182 = vst.msk [vmem:[#allocation2] sm:$0xff] %vm898, %v1174
      %1184 = vrot.lane.b32.xlu0 %v1175, 32
      %v1185 = vpop.permute.xlu0 %1184
      %vm1187 = vcmask 523520
      %1188 = vst.msk [vmem:[#allocation2] sm:$0xff] %vm1187, %v1185
      %1190 = vrot.lane.b32.xlu0 %v1176, 64
      %v1191 = vpop.permute.xlu0 %1190
      %vm1193 = vcmask 785920
      %1194 = vst.msk [vmem:[#allocation2] sm:$0xff] %vm1193, %v1191
      %1196 = vrot.lane.b32.xlu0 %v1177, 96
      %v1197 = vpop.permute.xlu0 %1196
      %vm1199 = vcmask 1048320
      %1200 = vst.msk [vmem:[#allocation2] sm:$0xff] %vm1199, %v1197
      %1201 = vst.msk [vmem:[#allocation2 + $0x8] sm:$0xff] %vm898, %v1178
      %1203 = vrot.lane.b32.xlu0 %v1179, 32
      %v1204 = vpop.permute.xlu0 %1203
      %1206 = vst.msk [vmem:[#allocation2 + $0x8] sm:$0xff] %vm1187, %v1204
      %1208 = vrot.lane.b32.xlu0 %v1180, 64
      %v1209 = vpop.permute.xlu0 %1208
      %1211 = vst.msk [vmem:[#allocation2 + $0x8] sm:$0xff] %vm1193, %v1209
      %1213 = vrot.lane.b32.xlu0 %v1181, 96
      %v1214 = vpop.permute.xlu0 %1213
      %1216 = vst.msk [vmem:[#allocation2 + $0x8] sm:$0xff] %vm1199, %v1214
      %v1217 = vld [vmem:[#allocation2] sm:$0xff]
      %v1218 = vld [vmem:[#allocation2 + $0x8] sm:$0xff]
      %v1219 = vpack.c.bf16 %v1217, %v1217
      %v1220 = vpack.c.bf16 %v1218, %v1218
      %v1221 = vld [vmem:[%s9] sm:$0xf]
      %v1222 = vld [vmem:[%s9 + $0x4] sm:$0xf]
      %v1223 = vld [vmem:[%s9 + $0x8] sm:$0xf]
      %v1224 = vld [vmem:[%s9 + $0xc] sm:$0xf]
      %v1225 = vld [vmem:[%s9 + $0x10] sm:$0xf]
      %v1226 = vld [vmem:[%s9 + $0x14] sm:$0xf]
      %v1227 = vld [vmem:[%s9 + $0x18] sm:$0xf]
      %v1228 = vld [vmem:[%s9 + $0x1c] sm:$0xf]
      %v1229 = vld [vmem:[%s9 + $0x20] sm:$0xf]
      %v1230 = vld [vmem:[%s9 + $0x24] sm:$0xf]
      %v1231 = vld [vmem:[%s9 + $0x28] sm:$0xf]
      %v1232 = vld [vmem:[%s9 + $0x2c] sm:$0xf]
      %v1233 = vld [vmem:[%s9 + $0x30] sm:$0xf]
      %v1234 = vld [vmem:[%s9 + $0x34] sm:$0xf]
      %v1235 = vld [vmem:[%s9 + $0x38] sm:$0xf]
      %v1236 = vld [vmem:[%s9 + $0x3c] sm:$0xf]
      %v1237 = vld [vmem:[%s9 + $0x40] sm:$0xf]
      %v1238 = vld [vmem:[%s9 + $0x44] sm:$0xf]
      %v1239 = vld [vmem:[%s9 + $0x48] sm:$0xf]
      %v1240 = vld [vmem:[%s9 + $0x4c] sm:$0xf]
      %v1241 = vld [vmem:[%s9 + $0x50] sm:$0xf]
      %v1242 = vld [vmem:[%s9 + $0x54] sm:$0xf]
      %v1243 = vld [vmem:[%s9 + $0x58] sm:$0xf]
      %v1244 = vld [vmem:[%s9 + $0x5c] sm:$0xf]
      %v1245 = vld [vmem:[%s9 + $0x60] sm:$0xf]
      %v1246 = vld [vmem:[%s9 + $0x64] sm:$0xf]
      %v1247 = vld [vmem:[%s9 + $0x68] sm:$0xf]
      %v1248 = vld [vmem:[%s9 + $0x6c] sm:$0xf]
      %v1249 = vld [vmem:[%s9 + $0x70] sm:$0xf]
      %v1250 = vld [vmem:[%s9 + $0x74] sm:$0xf]
      %v1251 = vld [vmem:[%s9 + $0x78] sm:$0xf]
      %v1252 = vld [vmem:[%s9 + $0x7c] sm:$0xf]
      %v1253 = vld [vmem:[%s10] sm:$0x1]
      %v1255 = vlaneseq
      %v1256 = vshrl.u32 %v1255, 7
      %v1257 = vsub.s32 0, %v1256
      %v1258 = vrot.slane %v1253, %v1257
      %v1292 = vunpack.c.l.b16 %v1221
      %v1293 = vunpack.c.l.b16 %v1222
      %v1294 = vunpack.c.l.b16 %v1223
      %v1295 = vunpack.c.l.b16 %v1224
      %v1296 = vunpack.c.l.b16 %v1225
      %v1297 = vunpack.c.l.b16 %v1226
      %v1298 = vunpack.c.l.b16 %v1227
      %v1299 = vunpack.c.l.b16 %v1228
      %v1300 = vunpack.c.l.b16 %v1229
      %v1301 = vunpack.c.l.b16 %v1230
      %v1302 = vunpack.c.l.b16 %v1231
      %v1303 = vunpack.c.l.b16 %v1232
      %v1304 = vunpack.c.l.b16 %v1233
      %v1305 = vunpack.c.l.b16 %v1234
      %v1306 = vunpack.c.l.b16 %v1235
      %v1307 = vunpack.c.l.b16 %v1236
      %v1308 = vunpack.c.l.b16 %v1237
      %v1309 = vunpack.c.l.b16 %v1238
      %v1310 = vunpack.c.l.b16 %v1239
      %v1311 = vunpack.c.l.b16 %v1240
      %v1312 = vunpack.c.l.b16 %v1241
      %v1313 = vunpack.c.l.b16 %v1242
      %v1314 = vunpack.c.l.b16 %v1243
      %v1315 = vunpack.c.l.b16 %v1244
      %v1316 = vunpack.c.l.b16 %v1245
      %v1317 = vunpack.c.l.b16 %v1246
      %v1318 = vunpack.c.l.b16 %v1247
      %v1319 = vunpack.c.l.b16 %v1248
      %v1320 = vunpack.c.l.b16 %v1249
      %v1321 = vunpack.c.l.b16 %v1250
      %v1322 = vunpack.c.l.b16 %v1251
      %v1323 = vunpack.c.l.b16 %v1252
      %v1324 = vpack.c.b16 %v1293, %v1292
      %v1325 = vpack.c.b16 %v1295, %v1294
      %v1326 = vpack.c.b16 %v1297, %v1296
      %v1327 = vpack.c.b16 %v1299, %v1298
      %v1328 = vpack.c.b16 %v1301, %v1300
      %v1329 = vpack.c.b16 %v1303, %v1302
      %v1330 = vpack.c.b16 %v1305, %v1304
      %v1331 = vpack.c.b16 %v1307, %v1306
      %v1332 = vpack.c.b16 %v1309, %v1308
      %v1333 = vpack.c.b16 %v1311, %v1310
      %v1334 = vpack.c.b16 %v1313, %v1312
      %v1335 = vpack.c.b16 %v1315, %v1314
      %v1336 = vpack.c.b16 %v1317, %v1316
      %v1337 = vpack.c.b16 %v1319, %v1318
      %v1338 = vpack.c.b16 %v1321, %v1320
      %v1339 = vpack.c.b16 %v1323, %v1322
      %1356 = vmatprep.subr.bf16.mxu0 0
      %1357 = vmatpush1.bf16.msra.mxu0 %v1324
      %1358 = vmatprep.subr.bf16.mxu0 0
      %1359 = vmatpush1.bf16.msra.mxu0 %v1325
      %1360 = vmatprep.subr.bf16.mxu0 0
      %1361 = vmatpush1.bf16.msra.mxu0 %v1326
      %1362 = vmatprep.subr.bf16.mxu0 0
      %1363 = vmatpush1.bf16.msra.mxu0 %v1327
      %1364 = vmatprep.subr.bf16.mxu0 0
      %1365 = vmatpush1.bf16.msra.mxu0 %v1328
      %1366 = vmatprep.subr.bf16.mxu0 0
      %1367 = vmatpush1.bf16.msra.mxu0 %v1329
      %1368 = vmatprep.subr.bf16.mxu0 0
      %1369 = vmatpush1.bf16.msra.mxu0 %v1330
      %1370 = vmatprep.subr.bf16.mxu0 0
      %1371 = vmatpush1.bf16.msra.mxu0 %v1331
      %1372 = vmatprep.subr.bf16.mxu0 0
      %1373 = vmatpush1.bf16.msra.mxu0 %v1332
      %1374 = vmatprep.subr.bf16.mxu0 0
      %1375 = vmatpush1.bf16.msra.mxu0 %v1333
      %1376 = vmatprep.subr.bf16.mxu0 0
      %1377 = vmatpush1.bf16.msra.mxu0 %v1334
      %1378 = vmatprep.subr.bf16.mxu0 0
      %1379 = vmatpush1.bf16.msra.mxu0 %v1335
      %1380 = vmatprep.subr.bf16.mxu0 0
      %1381 = vmatpush1.bf16.msra.mxu0 %v1336
      %1382 = vmatprep.subr.bf16.mxu0 0
      %1383 = vmatpush1.bf16.msra.mxu0 %v1337
      %1384 = vmatprep.subr.bf16.mxu0 0
      %1385 = vmatpush1.bf16.msra.mxu0 %v1338
      %1386 = vmatprep.subr.bf16.mxu0 0
      %1387 = vmatpush1.bf16.msra.mxu0 %v1339
      %1388 = vmatprep.mubr.bf16.mxu0 %v1220
      %1389 = vmatmul.mubr.bf16.gmra.mrb[0].mxu0 %v1219
      %v1390 = vpop.f32.mrb[0].mxu0
      %v1391 = vadd.f32 %v1258, %v1390
      %v1392 = vpop.f32.mrb[0].mxu0
      %v1393 = vpop.f32.mrb[0].mxu0
      %v1394 = vpop.f32.mrb[0].mxu0
      %1395 = vdwg.mxu0
      %vm1396 = vcmask 64512
      %1397 = vst.msk [vmem:[%s381] sm:$0xff] %vm1396, %v1391
      %p1398 = scmp.lt.s32.totalorder %s22, 1
      %s1399 = scalar_select %p1398, %s22, 1
      %s1400 = smul.addr %s1399, 8
      %s1401 = scalar_lea.vmem %s11, %s1400
      // Predicated region
      $region65: #{tpu_custom_call.1} parent=63 // pred_check
        %p1402 = pneg %p276
      $region66: #{tpu_custom_call.1} parent=63 // pred_check_branch
        %1404 = sbr.rel (%p1402) target = $region68
      $region67: #{tpu_custom_call.1} parent=63 // pred_region
        _
      $region68: #{tpu_custom_call.1} parent=63 // pred_fallthru
        _
    $region64: #{tpu_custom_call.1} parent=5 // pred_fallthru
      _
    %p1405 = scmp.le.s32.totalorder 2, %s17
    // Predicated region
    $region69: #{tpu_custom_call.1} parent=5 // pred_check
      %p1406 = pneg %p1405
    $region70: #{tpu_custom_call.1} parent=5 // pred_check_branch
      %1408 = sbr.rel (%p1406) target = $region72
    $region71: #{tpu_custom_call.1} parent=5 // pred_region
      %s1409 = ssub.s32 %s17, 2
      // Predicated region
      $region73: #{tpu_custom_call.1} parent=71 // pred_check
        %p1410 = pneg %p282
      $region74: #{tpu_custom_call.1} parent=71 // pred_check_branch
        %1412 = sbr.rel (%p1410) target = $region76
      $region75: #{tpu_custom_call.1} parent=71 // pred_region
        %p1413 = scmp.lt.s32.totalorder %s23, 1
        %s1414 = scalar_select %p1413, %s23, 1
        %s1415 = smul.addr %s1414, 8
        %s1416 = scalar_lea.vmem %s11, %s1415
      $region76: #{tpu_custom_call.1} parent=71 // pred_fallthru
        _
    $region72: #{tpu_custom_call.1} parent=5 // pred_fallthru
      _
  $region6: #{tpu_custom_call.1} parent=0 // loop_footer
    %s21 = sadd.s32 1, %s17
  $region7: #{tpu_custom_call.1} parent=0 // loop_footer_branch
    %16 = sbr.rel target = $region3
  $region8: #{tpu_custom_call.1} parent=0 // loop_exit
    _

// kernel: tpu_custom_call.1
$region0: #{tpu_custom_call.1}
  #allocation0 [shape = 'u32[]', space=smem, size = 0x4, offset = 0x4, fixed_abs, tag = 'smem constant byte address 0x4 - core index']
  #allocation1 [shape = 'u32[144,128]{1,0:T(1,128)}', space=vmem, size = 0x12000, scoped, tag = 'internal scratch']
  #allocation2 [shape = 'f32[8,256]{1,0:T(8,128)}', space=vmem, size = 0x2000, scoped, tag = 'scratch operand']
  %s0 = inlined_call_operand.vmem [shape: f32[16,16], index: 0, kind: input, shape index: {}]
  %s1 = inlined_call_operand.vmem [shape: f32[8,16], index: 1, kind: input, shape index: {}]
  %s2 = inlined_call_operand.vmem [shape: bf16[16,32], index: 2, kind: input, shape index: {}]
  %s3 = inlined_call_operand.vmem [shape: f32[8,32], index: 3, kind: input, shape index: {}]
  %s4 = inlined_call_operand.vmem [shape: f32[8,32], index: 4, kind: input, shape index: {}]
  %s5 = inlined_call_operand.vmem [shape: f32[8,32], index: 5, kind: input, shape index: {}]
  %s6 = inlined_call_operand.vmem [shape: bf16[32,32], index: 6, kind: input, shape index: {}]
  %s7 = inlined_call_operand.vmem [shape: f32[8,32], index: 7, kind: input, shape index: {}]
  %s8 = inlined_call_operand.vmem [shape: f32[8,32], index: 8, kind: input, shape index: {}]
  %s9 = inlined_call_operand.vmem [shape: bf16[256,8], index: 9, kind: input, shape index: {}]
  %s10 = inlined_call_operand.vmem [shape: f32[1,8], index: 10, kind: input, shape index: {}]
  %s11 = inlined_call_operand.vmem [shape: f32[16,8], index: 11, kind: output, shape index: {}]
  %s12 = sld [smem:[#allocation0]]
  $region77: #{tpu_custom_call.1} parent=0
    _
  %s14 = ssub.s32 1, %s12
  %s15 = scalar_select 0, %s14, %s12
  loop: start=0, step=1, limit=4
  $region2: #{tpu_custom_call.1} parent=0 // loop_pre_header
    _
  $region3: #{tpu_custom_call.1} parent=0 // loop_header
    %s17 = sphi 0, %s21
    %p18 = scmp.ge.s32.totalorder %s17, 4
    %s27 = sphi 0, %s29
    %s30 = sphi 0, %s27
    %s31 = sphi 0, %s30
    %s47 = sphi 0, %s31
    %s51 = sphi 0, %s51
    %s53 = sphi 0, %s51
    %s54 = sphi 0, %s53
    %s68 = sphi 0, %s54
    %s72 = sphi 0, %s72
    %s74 = sphi 0, %s72
    %s75 = sphi 0, %s74
    %s89 = sphi 0, %s75
    %s93 = sphi 0, %s93
    %s95 = sphi 0, %s93
    %s96 = sphi 0, %s95
    %s110 = sphi 0, %s96
    %s114 = sphi 0, %s114
    %s116 = sphi 0, %s114
    %s117 = sphi 0, %s116
    %s131 = sphi 0, %s117
    %s135 = sphi 0, %s135
    %s137 = sphi 0, %s135
    %s138 = sphi 0, %s137
    %s152 = sphi 0, %s138
    %s156 = sphi 0, %s156
    %s158 = sphi 0, %s156
    %s159 = sphi 0, %s158
    %s173 = sphi 0, %s159
    %s177 = sphi 0, %s177
    %s179 = sphi 0, %s177
    %s180 = sphi 0, %s179
    %s194 = sphi 0, %s180
    %s198 = sphi 0, %s198
    %s200 = sphi 0, %s198
    %s201 = sphi 0, %s200
    %s215 = sphi 0, %s201
    %s219 = sphi 0, %s219
    %s221 = sphi 0, %s219
    %s222 = sphi 0, %s221
    %s236 = sphi 0, %s222
    %s240 = sphi 0, %s240
    %s242 = sphi 0, %s240
    %s243 = sphi 0, %s242
    %s257 = sphi 0, %s243
    %s263 = sphi 0, %s265
    %s266 = sphi 0, %s263
    %s267 = sphi 0, %s266
    %s283 = sphi 0, %s267
  $region4: #{tpu_custom_call.1} parent=0 // loop_header_branch
    %20 = sbr.rel (%p18) target = $region8
  $region5: #{tpu_custom_call.1} parent=0 // loop_body
    %s22 = ssub.s32 %s17, 1
    %s23 = ssub.s32 %s17, 2
    %s24 = sadd.s32 %s17, 1
    %s25 = ssub.s32 %s17, %s24
    %p26 = scmp.eq.s32.totalorder %s25, 0
    %s28 = sadd.s32 %s27, 1
    %s29 = scalar_select %p26, %s27, %s28
    %p32 = pneg %p26
    %p33 = scmp.eq.s32.totalorder %s17, 1
    %p34 = por %p32, %p33
    %p35 = scmp.ne.s32.totalorder %s27, %s30
    %p36 = scmp.eq.s32.totalorder %s17, 0
    %p37 = por %p35, %p36
    %p38 = scmp.ne.s32.totalorder %s27, %s30
    %p39 = scmp.eq.s32.totalorder %s22, 1
    %p40 = por %p38, %p39
    %p41 = scmp.ne.s32.totalorder %s30, %s31
    %p42 = scmp.eq.s32.totalorder %s22, 0
    %p43 = por %p41, %p42
    %p44 = scmp.ne.s32.totalorder %s30, %s31
    %p45 = scmp.eq.s32.totalorder %s23, 1
    %p46 = por %p44, %p45
    %p48 = scmp.ne.s32.totalorder %s31, %s47
    %p49 = scmp.eq.s32.totalorder %s23, 0
    %p50 = por %p48, %p49
    %s52 = sadd.s32 %s51, 1
    %p55 = scmp.eq.s32.totalorder %s17, 1
    %p56 = scmp.ne.s32.totalorder %s51, %s53
    %p57 = scmp.eq.s32.totalorder %s17, 0
    %p58 = por %p56, %p57
    %p59 = scmp.ne.s32.totalorder %s51, %s53
    %p60 = scmp.eq.s32.totalorder %s22, 1
    %p61 = por %p59, %p60
    %p62 = scmp.ne.s32.totalorder %s53, %s54
    %p63 = scmp.eq.s32.totalorder %s22, 0
    %p64 = por %p62, %p63
    %p65 = scmp.ne.s32.totalorder %s53, %s54
    %p66 = scmp.eq.s32.totalorder %s23, 1
    %p67 = por %p65, %p66
    %p69 = scmp.ne.s32.totalorder %s54, %s68
    %p70 = scmp.eq.s32.totalorder %s23, 0
    %p71 = por %p69, %p70
    %s73 = sadd.s32 %s72, 1
    %p76 = scmp.eq.s32.totalorder %s17, 1
    %p77 = scmp.ne.s32.totalorder %s72, %s74
    %p78 = scmp.eq.s32.totalorder %s17, 0
    %p79 = por %p77, %p78
    %p80 = scmp.ne.s32.totalorder %s72, %s74
    %p81 = scmp.eq.s32.totalorder %s22, 1
    %p82 = por %p80, %p81
    %p83 = scmp.ne.s32.totalorder %s74, %s75
    %p84 = scmp.eq.s32.totalorder %s22, 0
    %p85 = por %p83, %p84
    %p86 = scmp.ne.s32.totalorder %s74, %s75
    %p87 = scmp.eq.s32.totalorder %s23, 1
    %p88 = por %p86, %p87
    %p90 = scmp.ne.s32.totalorder %s75, %s89
    %p91 = scmp.eq.s32.totalorder %s23, 0
    %p92 = por %p90, %p91
    %s94 = sadd.s32 %s93, 1
    %p97 = scmp.eq.s32.totalorder %s17, 1
    %p98 = scmp.ne.s32.totalorder %s93, %s95
    %p99 = scmp.eq.s32.totalorder %s17, 0
    %p100 = por %p98, %p99
    %p101 = scmp.ne.s32.totalorder %s93, %s95
    %p102 = scmp.eq.s32.totalorder %s22, 1
    %p103 = por %p101, %p102
    %p104 = scmp.ne.s32.totalorder %s95, %s96
    %p105 = scmp.eq.s32.totalorder %s22, 0
    %p106 = por %p104, %p105
    %p107 = scmp.ne.s32.totalorder %s95, %s96
    %p108 = scmp.eq.s32.totalorder %s23, 1
    %p109 = por %p107, %p108
    %p111 = scmp.ne.s32.totalorder %s96, %s110
    %p112 = scmp.eq.s32.totalorder %s23, 0
    %p113 = por %p111, %p112
    %s115 = sadd.s32 %s114, 1
    %p118 = scmp.eq.s32.totalorder %s17, 1
    %p119 = scmp.ne.s32.totalorder %s114, %s116
    %p120 = scmp.eq.s32.totalorder %s17, 0
    %p121 = por %p119, %p120
    %p122 = scmp.ne.s32.totalorder %s114, %s116
    %p123 = scmp.eq.s32.totalorder %s22, 1
    %p124 = por %p122, %p123
    %p125 = scmp.ne.s32.totalorder %s116, %s117
    %p126 = scmp.eq.s32.totalorder %s22, 0
    %p127 = por %p125, %p126
    %p128 = scmp.ne.s32.totalorder %s116, %s117
    %p129 = scmp.eq.s32.totalorder %s23, 1
    %p130 = por %p128, %p129
    %p132 = scmp.ne.s32.totalorder %s117, %s131
    %p133 = scmp.eq.s32.totalorder %s23, 0
    %p134 = por %p132, %p133
    %s136 = sadd.s32 %s135, 1
    %p139 = scmp.eq.s32.totalorder %s17, 1
    %p140 = scmp.ne.s32.totalorder %s135, %s137
    %p141 = scmp.eq.s32.totalorder %s17, 0
    %p142 = por %p140, %p141
    %p143 = scmp.ne.s32.totalorder %s135, %s137
    %p144 = scmp.eq.s32.totalorder %s22, 1
    %p145 = por %p143, %p144
    %p146 = scmp.ne.s32.totalorder %s137, %s138
    %p147 = scmp.eq.s32.totalorder %s22, 0
    %p148 = por %p146, %p147
    %p149 = scmp.ne.s32.totalorder %s137, %s138
    %p150 = scmp.eq.s32.totalorder %s23, 1
    %p151 = por %p149, %p150
    %p153 = scmp.ne.s32.totalorder %s138, %s152
    %p154 = scmp.eq.s32.totalorder %s23, 0
    %p155 = por %p153, %p154
    %s157 = sadd.s32 %s156, 1
    %p160 = scmp.eq.s32.totalorder %s17, 1
    %p161 = scmp.ne.s32.totalorder %s156, %s158
    %p162 = scmp.eq.s32.totalorder %s17, 0
    %p163 = por %p161, %p162
    %p164 = scmp.ne.s32.totalorder %s156, %s158
    %p165 = scmp.eq.s32.totalorder %s22, 1
    %p166 = por %p164, %p165
    %p167 = scmp.ne.s32.totalorder %s158, %s159
    %p168 = scmp.eq.s32.totalorder %s22, 0
    %p169 = por %p167, %p168
    %p170 = scmp.ne.s32.totalorder %s158, %s159
    %p171 = scmp.eq.s32.totalorder %s23, 1
    %p172 = por %p170, %p171
    %p174 = scmp.ne.s32.totalorder %s159, %s173
    %p175 = scmp.eq.s32.totalorder %s23, 0
    %p176 = por %p174, %p175
    %s178 = sadd.s32 %s177, 1
    %p181 = scmp.eq.s32.totalorder %s17, 1
    %p182 = scmp.ne.s32.totalorder %s177, %s179
    %p183 = scmp.eq.s32.totalorder %s17, 0
    %p184 = por %p182, %p183
    %p185 = scmp.ne.s32.totalorder %s177, %s179
    %p186 = scmp.eq.s32.totalorder %s22, 1
    %p187 = por %p185, %p186
    %p188 = scmp.ne.s32.totalorder %s179, %s180
    %p189 = scmp.eq.s32.totalorder %s22, 0
    %p190 = por %p188, %p189
    %p191 = scmp.ne.s32.totalorder %s179, %s180
    %p192 = scmp.eq.s32.totalorder %s23, 1
    %p193 = por %p191, %p192
    %p195 = scmp.ne.s32.totalorder %s180, %s194
    %p196 = scmp.eq.s32.totalorder %s23, 0
    %p197 = por %p195, %p196
    %s199 = sadd.s32 %s198, 1
    %p202 = scmp.eq.s32.totalorder %s17, 1
    %p203 = scmp.ne.s32.totalorder %s198, %s200
    %p204 = scmp.eq.s32.totalorder %s17, 0
    %p205 = por %p203, %p204
    %p206 = scmp.ne.s32.totalorder %s198, %s200
    %p207 = scmp.eq.s32.totalorder %s22, 1
    %p208 = por %p206, %p207
    %p209 = scmp.ne.s32.totalorder %s200, %s201
    %p210 = scmp.eq.s32.totalorder %s22, 0
    %p211 = por %p209, %p210
    %p212 = scmp.ne.s32.totalorder %s200, %s201
    %p213 = scmp.eq.s32.totalorder %s23, 1
    %p214 = por %p212, %p213
    %p216 = scmp.ne.s32.totalorder %s201, %s215
    %p217 = scmp.eq.s32.totalorder %s23, 0
    %p218 = por %p216, %p217
    %s220 = sadd.s32 %s219, 1
    %p223 = scmp.eq.s32.totalorder %s17, 1
    %p224 = scmp.ne.s32.totalorder %s219, %s221
    %p225 = scmp.eq.s32.totalorder %s17, 0
    %p226 = por %p224, %p225
    %p227 = scmp.ne.s32.totalorder %s219, %s221
    %p228 = scmp.eq.s32.totalorder %s22, 1
    %p229 = por %p227, %p228
    %p230 = scmp.ne.s32.totalorder %s221, %s222
    %p231 = scmp.eq.s32.totalorder %s22, 0
    %p232 = por %p230, %p231
    %p233 = scmp.ne.s32.totalorder %s221, %s222
    %p234 = scmp.eq.s32.totalorder %s23, 1
    %p235 = por %p233, %p234
    %p237 = scmp.ne.s32.totalorder %s222, %s236
    %p238 = scmp.eq.s32.totalorder %s23, 0
    %p239 = por %p237, %p238
    %s241 = sadd.s32 %s240, 1
    %p244 = scmp.eq.s32.totalorder %s17, 1
    %p245 = scmp.ne.s32.totalorder %s240, %s242
    %p246 = scmp.eq.s32.totalorder %s17, 0
    %p247 = por %p245, %p246
    %p248 = scmp.ne.s32.totalorder %s240, %s242
    %p249 = scmp.eq.s32.totalorder %s22, 1
    %p250 = por %p248, %p249
    %p251 = scmp.ne.s32.totalorder %s242, %s243
    %p252 = scmp.eq.s32.totalorder %s22, 0
    %p253 = por %p251, %p252
    %p254 = scmp.ne.s32.totalorder %s242, %s243
    %p255 = scmp.eq.s32.totalorder %s23, 1
    %p256 = por %p254, %p255
    %p258 = scmp.ne.s32.totalorder %s243, %s257
    %p259 = scmp.eq.s32.totalorder %s23, 0
    %p260 = por %p258, %p259
    %s261 = ssub.s32 %s17, %s24
    %p262 = scmp.eq.s32.totalorder %s261, 0
    %s264 = sadd.s32 %s263, 1
    %s265 = scalar_select %p262, %s263, %s264
    %p268 = pneg %p262
    %p269 = scmp.eq.s32.totalorder %s17, 1
    %p270 = por %p268, %p269
    %p271 = scmp.ne.s32.totalorder %s263, %s266
    %p272 = scmp.eq.s32.totalorder %s17, 0
    %p273 = por %p271, %p272
    %p274 = scmp.ne.s32.totalorder %s263, %s266
    %p275 = scmp.eq.s32.totalorder %s22, 1
    %p276 = por %p274, %p275
    %p277 = scmp.ne.s32.totalorder %s266, %s267
    %p278 = scmp.eq.s32.totalorder %s22, 0
    %p279 = por %p277, %p278
    %p280 = scmp.ne.s32.totalorder %s266, %s267
    %p281 = scmp.eq.s32.totalorder %s23, 1
    %p282 = por %p280, %p281
    %p284 = scmp.ne.s32.totalorder %s267, %s283
    %p285 = scmp.eq.s32.totalorder %s23, 0
    %p286 = por %p284, %p285
    %p287 = scmp.le.s32.totalorder 1, %s17
    %p288 = scmp.lt.s32.totalorder %s17, 3
    %p289 = pnand %p287, %p288
    %p290 = pneg %p289
    // Predicated region
    $region9: #{tpu_custom_call.1} parent=5 // pred_check
      _
    $region10: #{tpu_custom_call.1} parent=5 // pred_check_branch
      %292 = sbr.rel (%p289) target = $region12
    $region11: #{tpu_custom_call.1} parent=5 // pred_region
      %s293 = ssub.s32 %s17, 1
      // Predicated region
      $region13: #{tpu_custom_call.1} parent=11 // pred_check
        %p294 = pneg %p64
      $region14: #{tpu_custom_call.1} parent=11 // pred_check_branch
        %296 = sbr.rel (%p294) target = $region16
      $region15: #{tpu_custom_call.1} parent=11 // pred_region
        _
      $region16: #{tpu_custom_call.1} parent=11 // pred_fallthru
        _
      // Predicated region
      $region17: #{tpu_custom_call.1} parent=11 // pred_check
        %p297 = pneg %p85
      $region18: #{tpu_custom_call.1} parent=11 // pred_check_branch
        %299 = sbr.rel (%p297) target = $region20
      $region19: #{tpu_custom_call.1} parent=11 // pred_region
        _
      $region20: #{tpu_custom_call.1} parent=11 // pred_fallthru
        _
      // Predicated region
      $region21: #{tpu_custom_call.1} parent=11 // pred_check
        %p300 = pneg %p106
      $region22: #{tpu_custom_call.1} parent=11 // pred_check_branch
        %302 = sbr.rel (%p300) target = $region24
      $region23: #{tpu_custom_call.1} parent=11 // pred_region
        _
      $region24: #{tpu_custom_call.1} parent=11 // pred_fallthru
        _
      // Predicated region
      $region25: #{tpu_custom_call.1} parent=11 // pred_check
        %p303 = pneg %p127
      $region26: #{tpu_custom_call.1} parent=11 // pred_check_branch
        %305 = sbr.rel (%p303) target = $region28
      $region27: #{tpu_custom_call.1} parent=11 // pred_region
        _
      $region28: #{tpu_custom_call.1} parent=11 // pred_fallthru
        _
      // Predicated region
      $region29: #{tpu_custom_call.1} parent=11 // pred_check
        %p306 = pneg %p148
      $region30: #{tpu_custom_call.1} parent=11 // pred_check_branch
        %308 = sbr.rel (%p306) target = $region32
      $region31: #{tpu_custom_call.1} parent=11 // pred_region
        _
      $region32: #{tpu_custom_call.1} parent=11 // pred_fallthru
        _
      // Predicated region
      $region33: #{tpu_custom_call.1} parent=11 // pred_check
        %p309 = pneg %p169
      $region34: #{tpu_custom_call.1} parent=11 // pred_check_branch
        %311 = sbr.rel (%p309) target = $region36
      $region35: #{tpu_custom_call.1} parent=11 // pred_region
        _
      $region36: #{tpu_custom_call.1} parent=11 // pred_fallthru
        _
      // Predicated region
      $region37: #{tpu_custom_call.1} parent=11 // pred_check
        %p312 = pneg %p190
      $region38: #{tpu_custom_call.1} parent=11 // pred_check_branch
        %314 = sbr.rel (%p312) target = $region40
      $region39: #{tpu_custom_call.1} parent=11 // pred_region
        _
      $region40: #{tpu_custom_call.1} parent=11 // pred_fallthru
        _
      // Predicated region
      $region41: #{tpu_custom_call.1} parent=11 // pred_check
        %p315 = pneg %p211
      $region42: #{tpu_custom_call.1} parent=11 // pred_check_branch
        %317 = sbr.rel (%p315) target = $region44
      $region43: #{tpu_custom_call.1} parent=11 // pred_region
        _
      $region44: #{tpu_custom_call.1} parent=11 // pred_fallthru
        _
      // Predicated region
      $region45: #{tpu_custom_call.1} parent=11 // pred_check
        %p318 = pneg %p232
      $region46: #{tpu_custom_call.1} parent=11 // pred_check_branch
        %320 = sbr.rel (%p318) target = $region48
      $region47: #{tpu_custom_call.1} parent=11 // pred_region
        _
      $region48: #{tpu_custom_call.1} parent=11 // pred_fallthru
        _
      // Predicated region
      $region49: #{tpu_custom_call.1} parent=11 // pred_check
        %p321 = pneg %p253
      $region50: #{tpu_custom_call.1} parent=11 // pred_check_branch
        %323 = sbr.rel (%p321) target = $region52
      $region51: #{tpu_custom_call.1} parent=11 // pred_region
        _
      $region52: #{tpu_custom_call.1} parent=11 // pred_fallthru
        _
    $region12: #{tpu_custom_call.1} parent=5 // pred_fallthru
      _
    %p324 = scmp.lt.s32.totalorder %s17, 2
    // Predicated region
    $region53: #{tpu_custom_call.1} parent=5 // pred_check
      %p325 = pneg %p324
    $region54: #{tpu_custom_call.1} parent=5 // pred_check_branch
      %327 = sbr.rel (%p325) target = $region56
    $region55: #{tpu_custom_call.1} parent=5 // pred_region
      // Predicated region
      $region57: #{tpu_custom_call.1} parent=55 // pred_check
        %p328 = pneg %p37
      $region58: #{tpu_custom_call.1} parent=55 // pred_check_branch
        %330 = sbr.rel (%p328) target = $region60
      $region59: #{tpu_custom_call.1} parent=55 // pred_region
        %p331 = scmp.lt.s32.totalorder %s17, 1
        %s332 = scalar_select %p331, %s17, 1
        %s333 = smul.addr %s332, 8
        %s334 = scalar_lea.vmem %s0, %s333
      $region60: #{tpu_custom_call.1} parent=55 // pred_fallthru
        _
    $region56: #{tpu_custom_call.1} parent=5 // pred_fallthru
      _
    %p335 = scmp.le.s32.totalorder 1, %s17
    %p336 = scmp.lt.s32.totalorder %s17, 3
    %p337 = pnand %p335, %p336
    %p338 = pneg %p337
    // Predicated region
    $region61: #{tpu_custom_call.1} parent=5 // pred_check
      _
    $region62: #{tpu_custom_call.1} parent=5 // pred_check_branch
      %340 = sbr.rel (%p337) target = $region64
    $region63: #{tpu_custom_call.1} parent=5 // pred_region
      %s341 = ssub.s32 %s17, 1
      %p342 = scmp.lt.s32.totalorder %s22, 1
      %s343 = scalar_select %p342, %s22, 1
      %s344 = smul.addr %s343, 8
      %s345 = scalar_lea.vmem %s0, %s344
      %p346 = pneg %p43
      %p347 = pneg %p40
      %p348 = pneg %p64
      %p349 = pneg %p61
      %p350 = pneg %p85
      %p351 = pneg %p82
      %p352 = pneg %p106
      %p353 = pneg %p103
      %p354 = pneg %p127
      %p355 = pneg %p124
      %p356 = pneg %p148
      %p357 = pneg %p145
      %p358 = pneg %p169
      %p359 = pneg %p166
      %p360 = pneg %p190
      %p361 = pneg %p187
      %p362 = pneg %p211
      %p363 = pneg %p208
      %p364 = pneg %p232
      %p365 = pneg %p229
      %p366 = pneg %p253
      %p367 = pneg %p250
      %p368 = pneg %p279
      %p369 = pneg %p276
      %p370 = scmp.lt.s32.totalorder %s22, 1
      %s371 = scalar_select %p370, %s22, 1
      %s372 = smul.addr %s371, 8
      %s373 = scalar_lea.vmem %s11, %s372
      %p374 = scmp.lt.s32.totalorder %s22, 1
      %s375 = scalar_select %p374, %s22, 1
      %s376 = smul.addr %s375, 8
      %s377 = scalar_lea.vmem %s0, %s376
      %p378 = scmp.lt.s32.totalorder %s22, 1
      %s379 = scalar_select %p378, %s22, 1
      %s380 = smul.addr %s379, 8
      %s381 = scalar_lea.vmem %s11, %s380
      %v383 = vld [vmem:[%s377] sm:$0xff]
      %v384 = vld [vmem:[%s1] sm:$0xff]
      %v386 = vcombine.high %v384, %v384
      %v388 = vunpack.c.l.s4 1966171168
      %v389 = vunpack.c.0.s8 %v388
      %v390 = vlaneseq
      %v391 = vshrl.u32 %v390, 7
      %v392 = vsub.s32 %v389, %v391
      %v393 = vrot.slane %v384, %v392
      %v395 = vunpack.c.l.s4 1966171168
      %v396 = vunpack.c.0.s8 %v395
      %v397 = vlaneseq
      %v398 = vshrl.u32 %v397, 7
      %v399 = vsub.s32 %v396, %v398
      %v400 = vrot.slane %v386, %v399
      %v401 = vcombine.high %v393, %v393
      %v402 = vcombine.high %v400, %v400
      %v404 = vunpack.c.l.s4 1966171168
      %v405 = vunpack.c.0.s8 %v404
      %v406 = vlaneseq
      %v407 = vshrl.u32 %v406, 7
      %v408 = vsub.s32 %v405, %v407
      %v409 = vrot.slane %v393, %v408
      %v411 = vunpack.c.l.s4 1966171168
      %v412 = vunpack.c.0.s8 %v411
      %v413 = vlaneseq
      %v414 = vshrl.u32 %v413, 7
      %v415 = vsub.s32 %v412, %v414
      %v416 = vrot.slane %v400, %v415
      %v418 = vunpack.c.l.s4 1966171168
      %v419 = vunpack.c.0.s8 %v418
      %v420 = vlaneseq
      %v421 = vshrl.u32 %v420, 7
      %v422 = vsub.s32 %v419, %v421
      %v423 = vrot.slane %v401, %v422
      %v425 = vunpack.c.l.s4 1966171168
      %v426 = vunpack.c.0.s8 %v425
      %v427 = vlaneseq
      %v428 = vshrl.u32 %v427, 7
      %v429 = vsub.s32 %v426, %v428
      %v430 = vrot.slane %v402, %v429
      %v431 = vcombine.high %v409, %v409
      %v432 = vcombine.high %v416, %v416
      %v433 = vcombine.high %v423, %v423
      %v434 = vcombine.high %v430, %v430
      %v435 = vlaneseq
      %v436 = vshrl.u32 %v435, 7
      %v437 = vsub.s32 0, %v436
      %v438 = vrot.slane %v409, %v437
      %v439 = vlaneseq
      %v440 = vshrl.u32 %v439, 7
      %v441 = vsub.s32 0, %v440
      %v442 = vrot.slane %v423, %v441
      %v443 = vlaneseq
      %v444 = vshrl.u32 %v443, 7
      %v445 = vsub.s32 0, %v444
      %v446 = vrot.slane %v431, %v445
      %v447 = vlaneseq
      %v448 = vshrl.u32 %v447, 7
      %v449 = vsub.s32 0, %v448
      %v450 = vrot.slane %v433, %v449
      %v451 = vlaneseq
      %v452 = vshrl.u32 %v451, 7
      %v453 = vsub.s32 0, %v452
      %v454 = vrot.slane %v416, %v453
      %v455 = vlaneseq
      %v456 = vshrl.u32 %v455, 7
      %v457 = vsub.s32 0, %v456
      %v458 = vrot.slane %v430, %v457
      %v459 = vlaneseq
      %v460 = vshrl.u32 %v459, 7
      %v461 = vsub.s32 0, %v460
      %v462 = vrot.slane %v432, %v461
      %v463 = vlaneseq
      %v464 = vshrl.u32 %v463, 7
      %v465 = vsub.s32 0, %v464
      %v466 = vrot.slane %v434, %v465
      %v475 = vmul.f32 %v383, %v438
      %v476 = vmul.f32 %v383, %v442
      %v477 = vmul.f32 %v383, %v446
      %v478 = vmul.f32 %v383, %v450
      %v479 = vmul.f32 %v383, %v454
      %v480 = vmul.f32 %v383, %v458
      %v481 = vmul.f32 %v383, %v462
      %v482 = vmul.f32 %v383, %v466
      %v483 = vpack.c.bf16 %v476, %v475
      %v484 = vpack.c.bf16 %v478, %v477
      %v485 = vpack.c.bf16 %v480, %v479
      %v486 = vpack.c.bf16 %v482, %v481
      %v487 = vld [vmem:[%s2] sm:$0xf]
      %v488 = vld [vmem:[%s2 + $0x4] sm:$0xf]
      %v491 = vunpack.c.l.b16 %v487
      %v492 = vunpack.c.l.b16 %v488
      %v493 = vpack.c.b16 %v492, %v491
      %vm495 = vcmask 130048
      %v497 = vsel %vm495, %v483, 0
      %v500 = vsel %vm495, %v484, 0
      %v503 = vsel %vm495, %v485, 0
      %v506 = vsel %vm495, %v486, 0
      %508 = vmatprep.subr.bf16.mxu0 0
      %509 = vmatpush1.bf16.msra.mxu0 %v493
      %510 = vmatprep.subr.bf16.mxu0 0
      %511 = vmatpush1.bf16.msra.mxu0 0
      %512 = vmatprep.subr.bf16.mxu0 0
      %513 = vmatpush1.bf16.msra.mxu0 0
      %514 = vmatprep.subr.bf16.mxu0 0
      %515 = vmatpush1.bf16.msra.mxu0 0
      %516 = vmatprep.subr.bf16.mxu0 0
      %517 = vmatpush1.bf16.msra.mxu0 0
      %518 = vmatprep.subr.bf16.mxu0 0
      %519 = vmatpush1.bf16.msra.mxu0 0
      %520 = vmatprep.subr.bf16.mxu0 0
      %521 = vmatpush1.bf16.msra.mxu0 0
      %522 = vmatprep.subr.bf16.mxu0 0
      %523 = vmatpush1.bf16.msra.mxu0 0
      %524 = vmatprep.subr.bf16.mxu0 0
      %525 = vmatpush1.bf16.msra.mxu0 0
      %526 = vmatprep.subr.bf16.mxu0 0
      %527 = vmatpush1.bf16.msra.mxu0 0
      %528 = vmatprep.subr.bf16.mxu0 0
      %529 = vmatpush1.bf16.msra.mxu0 0
      %530 = vmatprep.subr.bf16.mxu0 0
      %531 = vmatpush1.bf16.msra.mxu0 0
      %532 = vmatprep.subr.bf16.mxu0 0
      %533 = vmatpush1.bf16.msra.mxu0 0
      %534 = vmatprep.subr.bf16.mxu0 0
      %535 = vmatpush1.bf16.msra.mxu0 0
      %536 = vmatprep.subr.bf16.mxu0 0
      %537 = vmatpush1.bf16.msra.mxu0 0
      %538 = vmatprep.subr.bf16.mxu0 0
      %539 = vmatpush1.bf16.msra.mxu0 0
      %540 = vmatprep.mubr.bf16.mxu0 0
      %541 = vmatmul.mubr.bf16.gmra.mrb[0].mxu0 %v497
      %v542 = vpop.f32.mrb[0].mxu0
      %v543 = vadd.f32 0.0, %v542
      %v544 = vpop.f32.mrb[0].mxu0
      %v545 = vpop.f32.mrb[0].mxu0
      %v546 = vadd.f32 0.0, %v545
      %v547 = vpop.f32.mrb[0].mxu0
      %548 = vmatprep.mubr.bf16.mxu0 0
      %549 = vmatmul.mubr.bf16.gmra.mrb[0].mxu0 %v500
      %v550 = vpop.f32.mrb[0].mxu0
      %v551 = vadd.f32 0.0, %v550
      %v552 = vpop.f32.mrb[0].mxu0
      %v553 = vpop.f32.mrb[0].mxu0
      %v554 = vadd.f32 0.0, %v553
      %v555 = vpop.f32.mrb[0].mxu0
      %556 = vmatprep.mubr.bf16.mxu0 0
      %557 = vmatmul.mubr.bf16.gmra.mrb[0].mxu0 %v503
      %v558 = vpop.f32.mrb[0].mxu0
      %v559 = vadd.f32 0.0, %v558
      %v560 = vpop.f32.mrb[0].mxu0
      %v561 = vpop.f32.mrb[0].mxu0
      %v562 = vadd.f32 0.0, %v561
      %v563 = vpop.f32.mrb[0].mxu0
      %564 = vmatprep.mubr.bf16.mxu0 0
      %565 = vmatmul.mubr.bf16.gmra.mrb[0].mxu0 %v506
      %v566 = vpop.f32.mrb[0].mxu0
      %v567 = vadd.f32 0.0, %v566
      %v568 = vpop.f32.mrb[0].mxu0
      %v569 = vpop.f32.mrb[0].mxu0
      %v570 = vadd.f32 0.0, %v569
      %v571 = vpop.f32.mrb[0].mxu0
      %572 = vdwg.mxu0
      %v573 = vld [vmem:[%s3] sm:$0xff]
      %v575 = vcombine.high %v573, %v573
      %v577 = vunpack.c.l.s4 1966171168
      %v578 = vunpack.c.0.s8 %v577
      %v579 = vlaneseq
      %v580 = vshrl.u32 %v579, 7
      %v581 = vsub.s32 %v578, %v580
      %v582 = vrot.slane %v573, %v581
      %v584 = vunpack.c.l.s4 1966171168
      %v585 = vunpack.c.0.s8 %v584
      %v586 = vlaneseq
      %v587 = vshrl.u32 %v586, 7
      %v588 = vsub.s32 %v585, %v587
      %v589 = vrot.slane %v575, %v588
      %v590 = vcombine.high %v582, %v582
      %v591 = vcombine.high %v589, %v589
      %v593 = vunpack.c.l.s4 1966171168
      %v594 = vunpack.c.0.s8 %v593
      %v595 = vlaneseq
      %v596 = vshrl.u32 %v595, 7
      %v597 = vsub.s32 %v594, %v596
      %v598 = vrot.slane %v582, %v597
      %v600 = vunpack.c.l.s4 1966171168
      %v601 = vunpack.c.0.s8 %v600
      %v602 = vlaneseq
      %v603 = vshrl.u32 %v602, 7
      %v604 = vsub.s32 %v601, %v603
      %v605 = vrot.slane %v589, %v604
      %v607 = vunpack.c.l.s4 1966171168
      %v608 = vunpack.c.0.s8 %v607
      %v609 = vlaneseq
      %v610 = vshrl.u32 %v609, 7
      %v611 = vsub.s32 %v608, %v610
      %v612 = vrot.slane %v590, %v611
      %v614 = vunpack.c.l.s4 1966171168
      %v615 = vunpack.c.0.s8 %v614
      %v616 = vlaneseq
      %v617 = vshrl.u32 %v616, 7
      %v618 = vsub.s32 %v615, %v617
      %v619 = vrot.slane %v591, %v618
      %v620 = vcombine.high %v598, %v598
      %v621 = vcombine.high %v605, %v605
      %v622 = vcombine.high %v612, %v612
      %v623 = vcombine.high %v619, %v619
      %v624 = vlaneseq
      %v625 = vshrl.u32 %v624, 7
      %v626 = vsub.s32 0, %v625
      %v627 = vrot.slane %v598, %v626
      %v628 = vlaneseq
      %v629 = vshrl.u32 %v628, 7
      %v630 = vsub.s32 0, %v629
      %v631 = vrot.slane %v612, %v630
      %v632 = vlaneseq
      %v633 = vshrl.u32 %v632, 7
      %v634 = vsub.s32 0, %v633
      %v635 = vrot.slane %v620, %v634
      %v636 = vlaneseq
      %v637 = vshrl.u32 %v636, 7
      %v638 = vsub.s32 0, %v637
      %v639 = vrot.slane %v622, %v638
      %v640 = vlaneseq
      %v641 = vshrl.u32 %v640, 7
      %v642 = vsub.s32 0, %v641
      %v643 = vrot.slane %v605, %v642
      %v644 = vlaneseq
      %v645 = vshrl.u32 %v644, 7
      %v646 = vsub.s32 0, %v645
      %v647 = vrot.slane %v619, %v646
      %v648 = vlaneseq
      %v649 = vshrl.u32 %v648, 7
      %v650 = vsub.s32 0, %v649
      %v651 = vrot.slane %v621, %v650
      %v652 = vlaneseq
      %v653 = vshrl.u32 %v652, 7
      %v654 = vsub.s32 0, %v653
      %v655 = vrot.slane %v623, %v654
      %v664 = vmul.f32 %v543, %v627
      %v665 = vmul.f32 %v546, %v631
      %v666 = vmul.f32 %v551, %v635
      %v667 = vmul.f32 %v554, %v639
      %v668 = vmul.f32 %v559, %v643
      %v669 = vmul.f32 %v562, %v647
      %v670 = vmul.f32 %v567, %v651
      %v671 = vmul.f32 %v570, %v655
      %v672 = vld [vmem:[%s4] sm:$0xff]
      %v674 = vcombine.high %v672, %v672
      %v676 = vunpack.c.l.s4 1966171168
      %v677 = vunpack.c.0.s8 %v676
      %v678 = vlaneseq
      %v679 = vshrl.u32 %v678, 7
      %v680 = vsub.s32 %v677, %v679
      %v681 = vrot.slane %v672, %v680
      %v683 = vunpack.c.l.s4 1966171168
      %v684 = vunpack.c.0.s8 %v683
      %v685 = vlaneseq
      %v686 = vshrl.u32 %v685, 7
      %v687 = vsub.s32 %v684, %v686
      %v688 = vrot.slane %v674, %v687
      %v689 = vcombine.high %v681, %v681
      %v690 = vcombine.high %v688, %v688
      %v692 = vunpack.c.l.s4 1966171168
      %v693 = vunpack.c.0.s8 %v692
      %v694 = vlaneseq
      %v695 = vshrl.u32 %v694, 7
      %v696 = vsub.s32 %v693, %v695
      %v697 = vrot.slane %v681, %v696
      %v699 = vunpack.c.l.s4 1966171168
      %v700 = vunpack.c.0.s8 %v699
      %v701 = vlaneseq
      %v702 = vshrl.u32 %v701, 7
      %v703 = vsub.s32 %v700, %v702
      %v704 = vrot.slane %v688, %v703
      %v706 = vunpack.c.l.s4 1966171168
      %v707 = vunpack.c.0.s8 %v706
      %v708 = vlaneseq
      %v709 = vshrl.u32 %v708, 7
      %v710 = vsub.s32 %v707, %v709
      %v711 = vrot.slane %v689, %v710
      %v713 = vunpack.c.l.s4 1966171168
      %v714 = vunpack.c.0.s8 %v713
      %v715 = vlaneseq
      %v716 = vshrl.u32 %v715, 7
      %v717 = vsub.s32 %v714, %v716
      %v718 = vrot.slane %v690, %v717
      %v719 = vcombine.high %v697, %v697
      %v720 = vcombine.high %v704, %v704
      %v721 = vcombine.high %v711, %v711
      %v722 = vcombine.high %v718, %v718
      %v723 = vlaneseq
      %v724 = vshrl.u32 %v723, 7
      %v725 = vsub.s32 0, %v724
      %v726 = vrot.slane %v697, %v725
      %v727 = vlaneseq
      %v728 = vshrl.u32 %v727, 7
      %v729 = vsub.s32 0, %v728
      %v730 = vrot.slane %v711, %v729
      %v731 = vlaneseq
      %v732 = vshrl.u32 %v731, 7
      %v733 = vsub.s32 0, %v732
      %v734 = vrot.slane %v719, %v733
      %v735 = vlaneseq
      %v736 = vshrl.u32 %v735, 7
      %v737 = vsub.s32 0, %v736
      %v738 = vrot.slane %v721, %v737
      %v739 = vlaneseq
      %v740 = vshrl.u32 %v739, 7
      %v741 = vsub.s32 0, %v740
      %v742 = vrot.slane %v704, %v741
      %v743 = vlaneseq
      %v744 = vshrl.u32 %v743, 7
      %v745 = vsub.s32 0, %v744
      %v746 = vrot.slane %v718, %v745
      %v747 = vlaneseq
      %v748 = vshrl.u32 %v747, 7
      %v749 = vsub.s32 0, %v748
      %v750 = vrot.slane %v720, %v749
      %v751 = vlaneseq
      %v752 = vshrl.u32 %v751, 7
      %v753 = vsub.s32 0, %v752
      %v754 = vrot.slane %v722, %v753
      %v763 = vadd.f32 %v664, %v726
      %v764 = vadd.f32 %v665, %v730
      %v765 = vadd.f32 %v666, %v734
      %v766 = vadd.f32 %v667, %v738
      %v767 = vadd.f32 %v668, %v742
      %v768 = vadd.f32 %v669, %v746
      %v769 = vadd.f32 %v670, %v750
      %v770 = vadd.f32 %v671, %v754
      %v771 = vmax.f32 %v763, 0.0
      %v772 = vmax.f32 %v764, 0.0
      %v773 = vmax.f32 %v765, 0.0
      %v774 = vmax.f32 %v766, 0.0
      %v775 = vmax.f32 %v767, 0.0
      %v776 = vmax.f32 %v768, 0.0
      %v777 = vmax.f32 %v769, 0.0
      %v778 = vmax.f32 %v770, 0.0
      %v779 = vld [vmem:[%s5] sm:$0xff]
      %v781 = vcombine.high %v779, %v779
      %v783 = vunpack.c.l.s4 1966171168
      %v784 = vunpack.c.0.s8 %v783
      %v785 = vlaneseq
      %v786 = vshrl.u32 %v785, 7
      %v787 = vsub.s32 %v784, %v786
      %v788 = vrot.slane %v779, %v787
      %v790 = vunpack.c.l.s4 1966171168
      %v791 = vunpack.c.0.s8 %v790
      %v792 = vlaneseq
      %v793 = vshrl.u32 %v792, 7
      %v794 = vsub.s32 %v791, %v793
      %v795 = vrot.slane %v781, %v794
      %v796 = vcombine.high %v788, %v788
      %v797 = vcombine.high %v795, %v795
      %v799 = vunpack.c.l.s4 1966171168
      %v800 = vunpack.c.0.s8 %v799
      %v801 = vlaneseq
      %v802 = vshrl.u32 %v801, 7
      %v803 = vsub.s32 %v800, %v802
      %v804 = vrot.slane %v788, %v803
      %v806 = vunpack.c.l.s4 1966171168
      %v807 = vunpack.c.0.s8 %v806
      %v808 = vlaneseq
      %v809 = vshrl.u32 %v808, 7
      %v810 = vsub.s32 %v807, %v809
      %v811 = vrot.slane %v795, %v810
      %v813 = vunpack.c.l.s4 1966171168
      %v814 = vunpack.c.0.s8 %v813
      %v815 = vlaneseq
      %v816 = vshrl.u32 %v815, 7
      %v817 = vsub.s32 %v814, %v816
      %v818 = vrot.slane %v796, %v817
      %v820 = vunpack.c.l.s4 1966171168
      %v821 = vunpack.c.0.s8 %v820
      %v822 = vlaneseq
      %v823 = vshrl.u32 %v822, 7
      %v824 = vsub.s32 %v821, %v823
      %v825 = vrot.slane %v797, %v824
      %v826 = vcombine.high %v804, %v804
      %v827 = vcombine.high %v811, %v811
      %v828 = vcombine.high %v818, %v818
      %v829 = vcombine.high %v825, %v825
      %v830 = vlaneseq
      %v831 = vshrl.u32 %v830, 7
      %v832 = vsub.s32 0, %v831
      %v833 = vrot.slane %v804, %v832
      %v834 = vlaneseq
      %v835 = vshrl.u32 %v834, 7
      %v836 = vsub.s32 0, %v835
      %v837 = vrot.slane %v818, %v836
      %v838 = vlaneseq
      %v839 = vshrl.u32 %v838, 7
      %v840 = vsub.s32 0, %v839
      %v841 = vrot.slane %v826, %v840
      %v842 = vlaneseq
      %v843 = vshrl.u32 %v842, 7
      %v844 = vsub.s32 0, %v843
      %v845 = vrot.slane %v828, %v844
      %v846 = vlaneseq
      %v847 = vshrl.u32 %v846, 7
      %v848 = vsub.s32 0, %v847
      %v849 = vrot.slane %v811, %v848
      %v850 = vlaneseq
      %v851 = vshrl.u32 %v850, 7
      %v852 = vsub.s32 0, %v851
      %v853 = vrot.slane %v825, %v852
      %v854 = vlaneseq
      %v855 = vshrl.u32 %v854, 7
      %v856 = vsub.s32 0, %v855
      %v857 = vrot.slane %v827, %v856
      %v858 = vlaneseq
      %v859 = vshrl.u32 %v858, 7
      %v860 = vsub.s32 0, %v859
      %v861 = vrot.slane %v829, %v860
      %v870 = vmul.f32 %v771, %v833
      %v871 = vmul.f32 %v772, %v837
      %v872 = vmul.f32 %v773, %v841
      %v873 = vmul.f32 %v774, %v845
      %v874 = vmul.f32 %v775, %v849
      %v875 = vmul.f32 %v776, %v853
      %v876 = vmul.f32 %v777, %v857
      %v877 = vmul.f32 %v778, %v861
      %v878 = vpack.c.bf16 %v871, %v870
      %v879 = vpack.c.bf16 %v873, %v872
      %v880 = vpack.c.bf16 %v875, %v874
      %v881 = vpack.c.bf16 %v877, %v876
      %v882 = vld [vmem:[%s6] sm:$0xf]
      %v883 = vld [vmem:[%s6 + $0x4] sm:$0xf]
      %v884 = vld [vmem:[%s6 + $0x8] sm:$0xf]
      %v885 = vld [vmem:[%s6 + $0xc] sm:$0xf]
      %v890 = vunpack.c.l.b16 %v882
      %v891 = vunpack.c.l.b16 %v883
      %v892 = vunpack.c.l.b16 %v884
      %v893 = vunpack.c.l.b16 %v885
      %v894 = vpack.c.b16 %v891, %v890
      %v895 = vpack.c.b16 %v893, %v892
      %vm898 = vcmask 261120
      %v900 = vsel %vm898, %v878, 0
      %v903 = vsel %vm898, %v879, 0
      %v906 = vsel %vm898, %v880, 0
      %v909 = vsel %vm898, %v881, 0
      %911 = vmatprep.subr.bf16.mxu0 0
      %912 = vmatpush1.bf16.msra.mxu0 %v894
      %913 = vmatprep.subr.bf16.mxu0 0
      %914 = vmatpush1.bf16.msra.mxu0 %v895
      %915 = vmatprep.subr.bf16.mxu0 0
      %916 = vmatpush1.bf16.msra.mxu0 0
      %917 = vmatprep.subr.bf16.mxu0 0
      %918 = vmatpush1.bf16.msra.mxu0 0
      %919 = vmatprep.subr.bf16.mxu0 0
      %920 = vmatpush1.bf16.msra.mxu0 0
      %921 = vmatprep.subr.bf16.mxu0 0
      %922 = vmatpush1.bf16.msra.mxu0 0
      %923 = vmatprep.subr.bf16.mxu0 0
      %924 = vmatpush1.bf16.msra.mxu0 0
      %925 = vmatprep.subr.bf16.mxu0 0
      %926 = vmatpush1.bf16.msra.mxu0 0
      %927 = vmatprep.subr.bf16.mxu0 0
      %928 = vmatpush1.bf16.msra.mxu0 0
      %929 = vmatprep.subr.bf16.mxu0 0
      %930 = vmatpush1.bf16.msra.mxu0 0
      %931 = vmatprep.subr.bf16.mxu0 0
      %932 = vmatpush1.bf16.msra.mxu0 0
      %933 = vmatprep.subr.bf16.mxu0 0
      %934 = vmatpush1.bf16.msra.mxu0 0
      %935 = vmatprep.subr.bf16.mxu0 0
      %936 = vmatpush1.bf16.msra.mxu0 0
      %937 = vmatprep.subr.bf16.mxu0 0
      %938 = vmatpush1.bf16.msra.mxu0 0
      %939 = vmatprep.subr.bf16.mxu0 0
      %940 = vmatpush1.bf16.msra.mxu0 0
      %941 = vmatprep.subr.bf16.mxu0 0
      %942 = vmatpush1.bf16.msra.mxu0 0
      %943 = vmatprep.mubr.bf16.mxu0 0
      %944 = vmatmul.mubr.bf16.gmra.mrb[0].mxu0 %v900
      %v945 = vpop.f32.mrb[0].mxu0
      %v946 = vadd.f32 0.0, %v945
      %v947 = vpop.f32.mrb[0].mxu0
      %v948 = vpop.f32.mrb[0].mxu0
      %v949 = vadd.f32 0.0, %v948
      %v950 = vpop.f32.mrb[0].mxu0
      %951 = vmatprep.mubr.bf16.mxu0 0
      %952 = vmatmul.mubr.bf16.gmra.mrb[0].mxu0 %v903
      %v953 = vpop.f32.mrb[0].mxu0
      %v954 = vadd.f32 0.0, %v953
      %v955 = vpop.f32.mrb[0].mxu0
      %v956 = vpop.f32.mrb[0].mxu0
      %v957 = vadd.f32 0.0, %v956
      %v958 = vpop.f32.mrb[0].mxu0
      %959 = vmatprep.mubr.bf16.mxu0 0
      %960 = vmatmul.mubr.bf16.gmra.mrb[0].mxu0 %v906
      %v961 = vpop.f32.mrb[0].mxu0
      %v962 = vadd.f32 0.0, %v961
      %v963 = vpop.f32.mrb[0].mxu0
      %v964 = vpop.f32.mrb[0].mxu0
      %v965 = vadd.f32 0.0, %v964
      %v966 = vpop.f32.mrb[0].mxu0
      %967 = vmatprep.mubr.bf16.mxu0 0
      %968 = vmatmul.mubr.bf16.gmra.mrb[0].mxu0 %v909
      %v969 = vpop.f32.mrb[0].mxu0
      %v970 = vadd.f32 0.0, %v969
      %v971 = vpop.f32.mrb[0].mxu0
      %v972 = vpop.f32.mrb[0].mxu0
      %v973 = vadd.f32 0.0, %v972
      %v974 = vpop.f32.mrb[0].mxu0
      %975 = vdwg.mxu0
      %v976 = vld [vmem:[%s7] sm:$0xff]
      %v978 = vcombine.high %v976, %v976
      %v980 = vunpack.c.l.s4 1966171168
      %v981 = vunpack.c.0.s8 %v980
      %v982 = vlaneseq
      %v983 = vshrl.u32 %v982, 7
      %v984 = vsub.s32 %v981, %v983
      %v985 = vrot.slane %v976, %v984
      %v987 = vunpack.c.l.s4 1966171168
      %v988 = vunpack.c.0.s8 %v987
      %v989 = vlaneseq
      %v990 = vshrl.u32 %v989, 7
      %v991 = vsub.s32 %v988, %v990
      %v992 = vrot.slane %v978, %v991
      %v993 = vcombine.high %v985, %v985
      %v994 = vcombine.high %v992, %v992
      %v996 = vunpack.c.l.s4 1966171168
      %v997 = vunpack.c.0.s8 %v996
      %v998 = vlaneseq
      %v999 = vshrl.u32 %v998, 7
      %v1000 = vsub.s32 %v997, %v999
      %v1001 = vrot.slane %v985, %v1000
      %v1003 = vunpack.c.l.s4 1966171168
      %v1004 = vunpack.c.0.s8 %v1003
      %v1005 = vlaneseq
      %v1006 = vshrl.u32 %v1005, 7
      %v1007 = vsub.s32 %v1004, %v1006
      %v1008 = vrot.slane %v992, %v1007
      %v1010 = vunpack.c.l.s4 1966171168
      %v1011 = vunpack.c.0.s8 %v1010
      %v1012 = vlaneseq
      %v1013 = vshrl.u32 %v1012, 7
      %v1014 = vsub.s32 %v1011, %v1013
      %v1015 = vrot.slane %v993, %v1014
      %v1017 = vunpack.c.l.s4 1966171168
      %v1018 = vunpack.c.0.s8 %v1017
      %v1019 = vlaneseq
      %v1020 = vshrl.u32 %v1019, 7
      %v1021 = vsub.s32 %v1018, %v1020
      %v1022 = vrot.slane %v994, %v1021
      %v1023 = vcombine.high %v1001, %v1001
      %v1024 = vcombine.high %v1008, %v1008
      %v1025 = vcombine.high %v1015, %v1015
      %v1026 = vcombine.high %v1022, %v1022
      %v1027 = vlaneseq
      %v1028 = vshrl.u32 %v1027, 7
      %v1029 = vsub.s32 0, %v1028
      %v1030 = vrot.slane %v1001, %v1029
      %v1031 = vlaneseq
      %v1032 = vshrl.u32 %v1031, 7
      %v1033 = vsub.s32 0, %v1032
      %v1034 = vrot.slane %v1015, %v1033
      %v1035 = vlaneseq
      %v1036 = vshrl.u32 %v1035, 7
      %v1037 = vsub.s32 0, %v1036
      %v1038 = vrot.slane %v1023, %v1037
      %v1039 = vlaneseq
      %v1040 = vshrl.u32 %v1039, 7
      %v1041 = vsub.s32 0, %v1040
      %v1042 = vrot.slane %v1025, %v1041
      %v1043 = vlaneseq
      %v1044 = vshrl.u32 %v1043, 7
      %v1045 = vsub.s32 0, %v1044
      %v1046 = vrot.slane %v1008, %v1045
      %v1047 = vlaneseq
      %v1048 = vshrl.u32 %v1047, 7
      %v1049 = vsub.s32 0, %v1048
      %v1050 = vrot.slane %v1022, %v1049
      %v1051 = vlaneseq
      %v1052 = vshrl.u32 %v1051, 7
      %v1053 = vsub.s32 0, %v1052
      %v1054 = vrot.slane %v1024, %v1053
      %v1055 = vlaneseq
      %v1056 = vshrl.u32 %v1055, 7
      %v1057 = vsub.s32 0, %v1056
      %v1058 = vrot.slane %v1026, %v1057
      %v1067 = vmul.f32 %v946, %v1030
      %v1068 = vmul.f32 %v949, %v1034
      %v1069 = vmul.f32 %v954, %v1038
      %v1070 = vmul.f32 %v957, %v1042
      %v1071 = vmul.f32 %v962, %v1046
      %v1072 = vmul.f32 %v965, %v1050
      %v1073 = vmul.f32 %v970, %v1054
      %v1074 = vmul.f32 %v973, %v1058
      %v1075 = vld [vmem:[%s8] sm:$0xff]
      %v1077 = vcombine.high %v1075, %v1075
      %v1079 = vunpack.c.l.s4 1966171168
      %v1080 = vunpack.c.0.s8 %v1079
      %v1081 = vlaneseq
      %v1082 = vshrl.u32 %v1081, 7
      %v1083 = vsub.s32 %v1080, %v1082
      %v1084 = vrot.slane %v1075, %v1083
      %v1086 = vunpack.c.l.s4 1966171168
      %v1087 = vunpack.c.0.s8 %v1086
      %v1088 = vlaneseq
      %v1089 = vshrl.u32 %v1088, 7
      %v1090 = vsub.s32 %v1087, %v1089
      %v1091 = vrot.slane %v1077, %v1090
      %v1092 = vcombine.high %v1084, %v1084
      %v1093 = vcombine.high %v1091, %v1091
      %v1095 = vunpack.c.l.s4 1966171168
      %v1096 = vunpack.c.0.s8 %v1095
      %v1097 = vlaneseq
      %v1098 = vshrl.u32 %v1097, 7
      %v1099 = vsub.s32 %v1096, %v1098
      %v1100 = vrot.slane %v1084, %v1099
      %v1102 = vunpack.c.l.s4 1966171168
      %v1103 = vunpack.c.0.s8 %v1102
      %v1104 = vlaneseq
      %v1105 = vshrl.u32 %v1104, 7
      %v1106 = vsub.s32 %v1103, %v1105
      %v1107 = vrot.slane %v1091, %v1106
      %v1109 = vunpack.c.l.s4 1966171168
      %v1110 = vunpack.c.0.s8 %v1109
      %v1111 = vlaneseq
      %v1112 = vshrl.u32 %v1111, 7
      %v1113 = vsub.s32 %v1110, %v1112
      %v1114 = vrot.slane %v1092, %v1113
      %v1116 = vunpack.c.l.s4 1966171168
      %v1117 = vunpack.c.0.s8 %v1116
      %v1118 = vlaneseq
      %v1119 = vshrl.u32 %v1118, 7
      %v1120 = vsub.s32 %v1117, %v1119
      %v1121 = vrot.slane %v1093, %v1120
      %v1122 = vcombine.high %v1100, %v1100
      %v1123 = vcombine.high %v1107, %v1107
      %v1124 = vcombine.high %v1114, %v1114
      %v1125 = vcombine.high %v1121, %v1121
      %v1126 = vlaneseq
      %v1127 = vshrl.u32 %v1126, 7
      %v1128 = vsub.s32 0, %v1127
      %v1129 = vrot.slane %v1100, %v1128
      %v1130 = vlaneseq
      %v1131 = vshrl.u32 %v1130, 7
      %v1132 = vsub.s32 0, %v1131
      %v1133 = vrot.slane %v1114, %v1132
      %v1134 = vlaneseq
      %v1135 = vshrl.u32 %v1134, 7
      %v1136 = vsub.s32 0, %v1135
      %v1137 = vrot.slane %v1122, %v1136
      %v1138 = vlaneseq
      %v1139 = vshrl.u32 %v1138, 7
      %v1140 = vsub.s32 0, %v1139
      %v1141 = vrot.slane %v1124, %v1140
      %v1142 = vlaneseq
      %v1143 = vshrl.u32 %v1142, 7
      %v1144 = vsub.s32 0, %v1143
      %v1145 = vrot.slane %v1107, %v1144
      %v1146 = vlaneseq
      %v1147 = vshrl.u32 %v1146, 7
      %v1148 = vsub.s32 0, %v1147
      %v1149 = vrot.slane %v1121, %v1148
      %v1150 = vlaneseq
      %v1151 = vshrl.u32 %v1150, 7
      %v1152 = vsub.s32 0, %v1151
      %v1153 = vrot.slane %v1123, %v1152
      %v1154 = vlaneseq
      %v1155 = vshrl.u32 %v1154, 7
      %v1156 = vsub.s32 0, %v1155
      %v1157 = vrot.slane %v1125, %v1156
      %v1166 = vadd.f32 %v1067, %v1129
      %v1167 = vadd.f32 %v1068, %v1133
      %v1168 = vadd.f32 %v1069, %v1137
      %v1169 = vadd.f32 %v1070, %v1141
      %v1170 = vadd.f32 %v1071, %v1145
      %v1171 = vadd.f32 %v1072, %v1149
      %v1172 = vadd.f32 %v1073, %v1153
      %v1173 = vadd.f32 %v1074, %v1157
      %v1174 = vmax.f32 %v1166, 0.0
      %v1175 = vmax.f32 %v1167, 0.0
      %v1176 = vmax.f32 %v1168, 0.0
      %v1177 = vmax.f32 %v1169, 0.0
      %v1178 = vmax.f32 %v1170, 0.0
      %v1179 = vmax.f32 %v1171, 0.0
      %v1180 = vmax.f32 %v1172, 0.0
      %v1181 = vmax.f32 %v1173, 0.0
      %1182 = vst.msk [vmem:[#allocation2] sm:$0xff] %vm898, %v1174
      %1184 = vrot.lane.b32.xlu0 %v1175, 32
      %v1185 = vpop.permute.xlu0 %1184
      %vm1187 = vcmask 523520
      %1188 = vst.msk [vmem:[#allocation2] sm:$0xff] %vm1187, %v1185
      %1190 = vrot.lane.b32.xlu0 %v1176, 64
      %v1191 = vpop.permute.xlu0 %1190
      %vm1193 = vcmask 785920
      %1194 = vst.msk [vmem:[#allocation2] sm:$0xff] %vm1193, %v1191
      %1196 = vrot.lane.b32.xlu0 %v1177, 96
      %v1197 = vpop.permute.xlu0 %1196
      %vm1199 = vcmask 1048320
      %1200 = vst.msk [vmem:[#allocation2] sm:$0xff] %vm1199, %v1197
      %1201 = vst.msk [vmem:[#allocation2 + $0x8] sm:$0xff] %vm898, %v1178
      %1203 = vrot.lane.b32.xlu0 %v1179, 32
      %v1204 = vpop.permute.xlu0 %1203
      %1206 = vst.msk [vmem:[#allocation2 + $0x8] sm:$0xff] %vm1187, %v1204
      %1208 = vrot.lane.b32.xlu0 %v1180, 64
      %v1209 = vpop.permute.xlu0 %1208
      %1211 = vst.msk [vmem:[#allocation2 + $0x8] sm:$0xff] %vm1193, %v1209
      %1213 = vrot.lane.b32.xlu0 %v1181, 96
      %v1214 = vpop.permute.xlu0 %1213
      %1216 = vst.msk [vmem:[#allocation2 + $0x8] sm:$0xff] %vm1199, %v1214
      %v1217 = vld [vmem:[#allocation2] sm:$0xff]
      %v1218 = vld [vmem:[#allocation2 + $0x8] sm:$0xff]
      %v1219 = vpack.c.bf16 %v1217, %v1217
      %v1220 = vpack.c.bf16 %v1218, %v1218
      %v1221 = vld [vmem:[%s9] sm:$0xf]
      %v1222 = vld [vmem:[%s9 + $0x4] sm:$0xf]
      %v1223 = vld [vmem:[%s9 + $0x8] sm:$0xf]
      %v1224 = vld [vmem:[%s9 + $0xc] sm:$0xf]
      %v1225 = vld [vmem:[%s9 + $0x10] sm:$0xf]
      %v1226 = vld [vmem:[%s9 + $0x14] sm:$0xf]
      %v1227 = vld [vmem:[%s9 + $0x18] sm:$0xf]
      %v1228 = vld [vmem:[%s9 + $0x1c] sm:$0xf]
      %v1229 = vld [vmem:[%s9 + $0x20] sm:$0xf]
      %v1230 = vld [vmem:[%s9 + $0x24] sm:$0xf]
      %v1231 = vld [vmem:[%s9 + $0x28] sm:$0xf]
      %v1232 = vld [vmem:[%s9 + $0x2c] sm:$0xf]
      %v1233 = vld [vmem:[%s9 + $0x30] sm:$0xf]
      %v1234 = vld [vmem:[%s9 + $0x34] sm:$0xf]
      %v1235 = vld [vmem:[%s9 + $0x38] sm:$0xf]
      %v1236 = vld [vmem:[%s9 + $0x3c] sm:$0xf]
      %v1237 = vld [vmem:[%s9 + $0x40] sm:$0xf]
      %v1238 = vld [vmem:[%s9 + $0x44] sm:$0xf]
      %v1239 = vld [vmem:[%s9 + $0x48] sm:$0xf]
      %v1240 = vld [vmem:[%s9 + $0x4c] sm:$0xf]
      %v1241 = vld [vmem:[%s9 + $0x50] sm:$0xf]
      %v1242 = vld [vmem:[%s9 + $0x54] sm:$0xf]
      %v1243 = vld [vmem:[%s9 + $0x58] sm:$0xf]
      %v1244 = vld [vmem:[%s9 + $0x5c] sm:$0xf]
      %v1245 = vld [vmem:[%s9 + $0x60] sm:$0xf]
      %v1246 = vld [vmem:[%s9 + $0x64] sm:$0xf]
      %v1247 = vld [vmem:[%s9 + $0x68] sm:$0xf]
      %v1248 = vld [vmem:[%s9 + $0x6c] sm:$0xf]
      %v1249 = vld [vmem:[%s9 + $0x70] sm:$0xf]
      %v1250 = vld [vmem:[%s9 + $0x74] sm:$0xf]
      %v1251 = vld [vmem:[%s9 + $0x78] sm:$0xf]
      %v1252 = vld [vmem:[%s9 + $0x7c] sm:$0xf]
      %v1253 = vld [vmem:[%s10] sm:$0x1]
      %v1255 = vlaneseq
      %v1256 = vshrl.u32 %v1255, 7
      %v1257 = vsub.s32 0, %v1256
      %v1258 = vrot.slane %v1253, %v1257
      %v1292 = vunpack.c.l.b16 %v1221
      %v1293 = vunpack.c.l.b16 %v1222
      %v1294 = vunpack.c.l.b16 %v1223
      %v1295 = vunpack.c.l.b16 %v1224
      %v1296 = vunpack.c.l.b16 %v1225
      %v1297 = vunpack.c.l.b16 %v1226
      %v1298 = vunpack.c.l.b16 %v1227
      %v1299 = vunpack.c.l.b16 %v1228
      %v1300 = vunpack.c.l.b16 %v1229
      %v1301 = vunpack.c.l.b16 %v1230
      %v1302 = vunpack.c.l.b16 %v1231
      %v1303 = vunpack.c.l.b16 %v1232
      %v1304 = vunpack.c.l.b16 %v1233
      %v1305 = vunpack.c.l.b16 %v1234
      %v1306 = vunpack.c.l.b16 %v1235
      %v1307 = vunpack.c.l.b16 %v1236
      %v1308 = vunpack.c.l.b16 %v1237
      %v1309 = vunpack.c.l.b16 %v1238
      %v1310 = vunpack.c.l.b16 %v1239
      %v1311 = vunpack.c.l.b16 %v1240
      %v1312 = vunpack.c.l.b16 %v1241
      %v1313 = vunpack.c.l.b16 %v1242
      %v1314 = vunpack.c.l.b16 %v1243
      %v1315 = vunpack.c.l.b16 %v1244
      %v1316 = vunpack.c.l.b16 %v1245
      %v1317 = vunpack.c.l.b16 %v1246
      %v1318 = vunpack.c.l.b16 %v1247
      %v1319 = vunpack.c.l.b16 %v1248
      %v1320 = vunpack.c.l.b16 %v1249
      %v1321 = vunpack.c.l.b16 %v1250
      %v1322 = vunpack.c.l.b16 %v1251
      %v1323 = vunpack.c.l.b16 %v1252
      %v1324 = vpack.c.b16 %v1293, %v1292
      %v1325 = vpack.c.b16 %v1295, %v1294
      %v1326 = vpack.c.b16 %v1297, %v1296
      %v1327 = vpack.c.b16 %v1299, %v1298
      %v1328 = vpack.c.b16 %v1301, %v1300
      %v1329 = vpack.c.b16 %v1303, %v1302
      %v1330 = vpack.c.b16 %v1305, %v1304
      %v1331 = vpack.c.b16 %v1307, %v1306
      %v1332 = vpack.c.b16 %v1309, %v1308
      %v1333 = vpack.c.b16 %v1311, %v1310
      %v1334 = vpack.c.b16 %v1313, %v1312
      %v1335 = vpack.c.b16 %v1315, %v1314
      %v1336 = vpack.c.b16 %v1317, %v1316
      %v1337 = vpack.c.b16 %v1319, %v1318
      %v1338 = vpack.c.b16 %v1321, %v1320
      %v1339 = vpack.c.b16 %v1323, %v1322
      %1356 = vmatprep.subr.bf16.mxu0 0
      %1357 = vmatpush1.bf16.msra.mxu0 %v1324
      %1358 = vmatprep.subr.bf16.mxu0 0
      %1359 = vmatpush1.bf16.msra.mxu0 %v1325
      %1360 = vmatprep.subr.bf16.mxu0 0
      %1361 = vmatpush1.bf16.msra.mxu0 %v1326
      %1362 = vmatprep.subr.bf16.mxu0 0
      %1363 = vmatpush1.bf16.msra.mxu0 %v1327
      %1364 = vmatprep.subr.bf16.mxu0 0
      %1365 = vmatpush1.bf16.msra.mxu0 %v1328
      %1366 = vmatprep.subr.bf16.mxu0 0
      %1367 = vmatpush1.bf16.msra.mxu0 %v1329
      %1368 = vmatprep.subr.bf16.mxu0 0
      %1369 = vmatpush1.bf16.msra.mxu0 %v1330
      %1370 = vmatprep.subr.bf16.mxu0 0
      %1371 = vmatpush1.bf16.msra.mxu0 %v1331
      %1372 = vmatprep.subr.bf16.mxu0 0
      %1373 = vmatpush1.bf16.msra.mxu0 %v1332
      %1374 = vmatprep.subr.bf16.mxu0 0
      %1375 = vmatpush1.bf16.msra.mxu0 %v1333
      %1376 = vmatprep.subr.bf16.mxu0 0
      %1377 = vmatpush1.bf16.msra.mxu0 %v1334
      %1378 = vmatprep.subr.bf16.mxu0 0
      %1379 = vmatpush1.bf16.msra.mxu0 %v1335
      %1380 = vmatprep.subr.bf16.mxu0 0
      %1381 = vmatpush1.bf16.msra.mxu0 %v1336
      %1382 = vmatprep.subr.bf16.mxu0 0
      %1383 = vmatpush1.bf16.msra.mxu0 %v1337
      %1384 = vmatprep.subr.bf16.mxu0 0
      %1385 = vmatpush1.bf16.msra.mxu0 %v1338
      %1386 = vmatprep.subr.bf16.mxu0 0
      %1387 = vmatpush1.bf16.msra.mxu0 %v1339
      %1388 = vmatprep.mubr.bf16.mxu0 %v1220
      %1389 = vmatmul.mubr.bf16.gmra.mrb[0].mxu0 %v1219
      %v1390 = vpop.f32.mrb[0].mxu0
      %v1391 = vadd.f32 %v1258, %v1390
      %v1392 = vpop.f32.mrb[0].mxu0
      %v1393 = vpop.f32.mrb[0].mxu0
      %v1394 = vpop.f32.mrb[0].mxu0
      %1395 = vdwg.mxu0
      %vm1396 = vcmask 64512
      %1397 = vst.msk [vmem:[%s381] sm:$0xff] %vm1396, %v1391
      %p1398 = scmp.lt.s32.totalorder %s22, 1
      %s1399 = scalar_select %p1398, %s22, 1
      %s1400 = smul.addr %s1399, 8
      %s1401 = scalar_lea.vmem %s11, %s1400
      // Predicated region
      $region65: #{tpu_custom_call.1} parent=63 // pred_check
        %p1402 = pneg %p276
      $region66: #{tpu_custom_call.1} parent=63 // pred_check_branch
        %1404 = sbr.rel (%p1402) target = $region68
      $region67: #{tpu_custom_call.1} parent=63 // pred_region
        _
      $region68: #{tpu_custom_call.1} parent=63 // pred_fallthru
        _
    $region64: #{tpu_custom_call.1} parent=5 // pred_fallthru
      _
    %p1405 = scmp.le.s32.totalorder 2, %s17
    // Predicated region
    $region69: #{tpu_custom_call.1} parent=5 // pred_check
      %p1406 = pneg %p1405
    $region70: #{tpu_custom_call.1} parent=5 // pred_check_branch
      %1408 = sbr.rel (%p1406) target = $region72
    $region71: #{tpu_custom_call.1} parent=5 // pred_region
      %s1409 = ssub.s32 %s17, 2
      // Predicated region
      $region73: #{tpu_custom_call.1} parent=71 // pred_check
        %p1410 = pneg %p282
      $region74: #{tpu_custom_call.1} parent=71 // pred_check_branch
        %1412 = sbr.rel (%p1410) target = $region76
      $region75: #{tpu_custom_call.1} parent=71 // pred_region
        %p1413 = scmp.lt.s32.totalorder %s23, 1
        %s1414 = scalar_select %p1413, %s23, 1
        %s1415 = smul.addr %s1414, 8
        %s1416 = scalar_lea.vmem %s11, %s1415
      $region76: #{tpu_custom_call.1} parent=71 // pred_fallthru
        _
    $region72: #{tpu_custom_call.1} parent=5 // pred_fallthru
      _
  $region6: #{tpu_custom_call.1} parent=0 // loop_footer
    %s21 = sadd.s32 1, %s17
  $region7: #{tpu_custom_call.1} parent=0 // loop_footer_branch
    %16 = sbr.rel target = $region3
  $region8: #{tpu_custom_call.1} parent=0 // loop_exit
    _

</llo_original>
